<compile_context>
chip_gen: v7x
topology: tpu7x:2x2x1
jax: 0.10.0
libtpu: 0.0.40
codegen_flags: <defaults>
</compile_context>

<pallas_src>
import functools

import numpy as np
import jax
import jax.numpy as jnp
from jax import lax
from jax.experimental import pallas as pl
from jax.experimental.pallas import tpu as pltpu

EPS = 1e-5  # nn.InstanceNorm3d default eps


def _fold_channel_groups(v, group, width):
    """v: (1, group*width) with lane index = w*group + c.
    Returns per-channel totals (sum over all w) broadcast back onto every lane of that channel.
    Exact f32: log-step circular lane rotations (XLU slot) when `width` is a power of two,
    otherwise a linear rotation loop."""
    if width & (width - 1) == 0:
        total = v
        shift = group
        while shift < group * width:
            total = total + pltpu.roll(total, shift=shift, axis=1)
            shift *= 2
        return total
    total = v
    for w in range(1, width):
        total = total + pltpu.roll(v, shift=w * group, axis=1)
    return total


def convblock_kernel(x_ref, w_ref, gamma_ref, beta_ref, o_ref, *, W, Cout):
    """NB samples per grid step.

    x_ref:     (NB, D*H, K*K*Wp*Cin)  kd/kh pre-shifted, zero-padded, lane-packed input
    w_ref:     (K*K*Wp*Cin, W*Cout)   banded weight slab (all taps folded into the contraction)
    gamma_ref: (1, W*Cout)            instance-norm scale, lane layout w*Cout + c
    beta_ref:  (1, W*Cout)            instance-norm shift, same layout
    o_ref:     (NB, D*H, W*Cout)      lane-dense (128-wide) output tiles
    """
    NB, DH, WCout = o_ref.shape
    n = jnp.float32(DH * W)
    w_slab = w_ref[...]
    gamma = gamma_ref[...]
    beta = beta_ref[...]

    for s in range(NB):  # static unroll; NB is 1 (v7x) or N (v5e/v6e)
        # ---- 3D conv (stride 1): one MXU contraction, all 27 taps folded into the 648 axis ----
        acc = jnp.dot(x_ref[s], w_slab, preferred_element_type=jnp.float32)  # (DH, WCout) f32

        # ---- InstanceNorm3d: per-sample per-channel stats over D*H*W, biased variance ----
        col_sum = jnp.sum(acc, axis=0, keepdims=True)        # (1, WCout) dense sublane reduce
        col_sq = jnp.sum(acc * acc, axis=0, keepdims=True)   # (1, WCout)
        mean = _fold_channel_groups(col_sum, Cout, W) / n    # per-channel mean, lane-broadcast
        ex2 = _fold_channel_groups(col_sq, Cout, W) / n
        var = ex2 - mean * mean                              # E[x^2] - mean^2 (biased)
        inv_std = lax.rsqrt(var + EPS)                       # EUP slot
        scale = inv_std * gamma                              # fold gamma into scale (row op)
        shift = beta - mean * scale                          # fold mean into shift (row op)

        # ---- Dropout3d(p=0.0) is identity at these settings ----
        # TODO(synk): training-mode Dropout3d (channel-wise mask) not implemented; p=0.0 here.

        # ---- affine + ReLU + lane-dense store ----
        o_ref[s] = jnp.maximum(acc * scale + shift, 0.0).astype(o_ref.dtype)


def _samples_per_step(n_batch):
    # v7x has two TensorCores per chip -> keep one sample per ("parallel") grid step so both
    # cores get work.  v5e/v6e are single-TC -> fold the whole batch into one grid step
    # (saves ~0.35us/step pipeline prolog on an overhead-dominated kernel).
    kind = jax.devices()[0].device_kind.lower()
    return 1 if "v7" in kind else n_batch


def conv_block_forward(x_ncdhw, w_oidhw, gamma, beta):
    """ConvBlock forward. x: (N,Cin,D,H,W) f32; w: (Cout,Cin,K,K,K); gamma/beta: (Cout,)."""
    N, Cin, D, H, W = x_ncdhw.shape
    Cout, _, K, _, _ = w_oidhw.shape
    pad = K // 2
    Dp, Hp, Wp = D + 2 * pad, H + 2 * pad, W + 2 * pad
    DH, WCout, KKWC = D * H, W * Cout, K * K * Wp * Cin

    # ---- layout plumbing (XLA glue, outside the kernel) ----
    # NCDHW -> NDHWC, zero spatial padding.
    x = jnp.transpose(x_ncdhw, (0, 2, 3, 4, 1)).astype(jnp.float32)
    xp = jnp.pad(x, ((0, 0), (pad, pad), (pad, pad), (pad, pad), (0, 0)))  # (N,Dp,Hp,Wp,Cin)
    # Fold BOTH the kd and kh taps onto the lane axis so the kernel is a single matmul:
    #   x_f[n, d*H + h, ((kd*K + kh)*Wp + wp)*Cin + ci] = xp[n, d+kd, h+kh, wp, ci]
    x_f = jnp.stack(
        [xp[:, kd:kd + D, kh:kh + H].reshape(N, DH, Wp * Cin)
         for kd in range(K) for kh in range(K)],
        axis=2).reshape(N, DH, KKWC)

    # Banded weight slab folding all taps + channel mix, built with a single einsum against a
    # constant 0/1 band indicator (exact: each output element is one product with 1.0):
    #   wb[((kd*K+kh)*Wp + wp)*Cin + ci, w*Cout + co] = w_oidhw[co, ci, kd, kh, kw],  wp = w + kw
    wt = jnp.transpose(w_oidhw, (2, 3, 4, 1, 0)).astype(jnp.float32)   # (K,K,K,Cin,Cout)
    band = np.zeros((K, Wp, W), np.float32)
    for kw in range(K):
        band[kw, kw:kw + W, :] += np.eye(W, dtype=np.float32)         # band[kw, w+kw, w] = 1
    wb = jnp.einsum('dhkio,kpw->dhpiwo', wt, band,
                    precision=lax.Precision.HIGHEST).reshape(KKWC, WCout)

    # gamma/beta tiled to the lane layout w*Cout + c.
    g = jnp.tile(gamma.astype(jnp.float32), W).reshape(1, WCout)
    b = jnp.tile(beta.astype(jnp.float32), W).reshape(1, WCout)

    NB = _samples_per_step(N)
    kernel = functools.partial(convblock_kernel, W=W, Cout=Cout)
    out = pl.pallas_call(
        kernel,
        out_shape=jax.ShapeDtypeStruct((N, DH, WCout), jnp.float32),
        grid=(N // NB,),
        in_specs=[
            pl.BlockSpec((NB, DH, KKWC), lambda i: (i, 0, 0)),
            pl.BlockSpec((KKWC, WCout), lambda i: (0, 0)),
            pl.BlockSpec((1, WCout), lambda i: (0, 0)),
            pl.BlockSpec((1, WCout), lambda i: (0, 0)),
        ],
        out_specs=pl.BlockSpec((NB, DH, WCout), lambda i: (i, 0, 0)),
        # No carried state across grid steps -> parallel (two TensorCores split N on v7x).
        compiler_params=pltpu.CompilerParams(dimension_semantics=("parallel",)),
    )(x_f, wb, g, b)

    # TODO(synk): if D*H*W grows, budget VMEM against v7x (64 MiB phys / 32 MiB scoped) rather
    # than v5e/v6e's 128 MiB: add a D grid axis with a 1-plane halo and carry per-channel sums
    # in VMEM scratch (finalize under pl.when), setting vmem_limit_bytes explicitly.

    # Back to PyTorch's NCDHW.
    out = out.reshape(N, D, H, W, Cout)
    return jnp.transpose(out, (0, 4, 1, 2, 3))


def reference_forward(x_ncdhw, w_oidhw, gamma, beta):
    """Pure-JAX reference matching PyTorch ConvBlock semantics (true-f32 conv)."""
    y = lax.conv_general_dilated(
        x_ncdhw, w_oidhw, window_strides=(1, 1, 1),
        padding=((1, 1), (1, 1), (1, 1)),
        dimension_numbers=("NCDHW", "OIDHW", "NCDHW"),
        precision=lax.Precision.HIGHEST)
    mean = y.mean(axis=(2, 3, 4), keepdims=True)
    var = ((y - mean) ** 2).mean(axis=(2, 3, 4), keepdims=True)  # biased
    yn = (y - mean) / jnp.sqrt(var + EPS)
    yn = yn * gamma.reshape(1, -1, 1, 1, 1) + beta.reshape(1, -1, 1, 1, 1)
    return jnp.maximum(yn, 0.0)


if __name__ == "__main__":
    N, Cin, Cout = 2, 4, 8
    D, H, W = 8, 16, 16
    K = 3

    key = jax.random.PRNGKey(0)
    kx, kw, kg, kb = jax.random.split(key, 4)

    x = jax.random.normal(kx, (N, Cin, D, H, W), dtype=jnp.float32)

    # Kaiming-uniform-like conv weight init (PyTorch OIDHW layout).
    fan_in = Cin * K * K * K
    bound = 1.0 / float(np.sqrt(fan_in))
    w = jax.random.uniform(kw, (Cout, Cin, K, K, K), dtype=jnp.float32,
                           minval=-bound, maxval=bound)

    # Non-trivial affine params to exercise the tiled gamma/beta path.
    gamma = jax.random.uniform(kg, (Cout,), dtype=jnp.float32, minval=0.5, maxval=1.5)
    beta = jax.random.uniform(kb, (Cout,), dtype=jnp.float32, minval=-0.5, maxval=0.5)

    out = jax.jit(conv_block_forward)(x, w, gamma, beta)
    out = jax.block_until_ready(out)

    ref = jax.block_until_ready(reference_forward(x, w, gamma, beta))

    assert out.shape == (N, Cout, D, H, W), out.shape
    max_err = float(jnp.max(jnp.abs(out - ref)))
    # Tolerance covers MXU f32 multi-pass rounding over the 648-deep contraction after the
    # 1/std rescale; a structural bug (wrong tap / norm / affine layout) gives errors >= 0.05.
    assert max_err < 5e-3, max_err

    print("KERNEL_OK")
</pallas_src>

<mosaic_0001>
module attributes {stable_mosaic.version = 11 : i64} {
  func.func @convblock_kernel(%arg0: i32, %arg1: memref<2x128x648xf32, #tpu.memory_space<vmem>>, %arg2: memref<648x128xf32, #tpu.memory_space<vmem>>, %arg3: memref<1x128xf32, #tpu.memory_space<vmem>>, %arg4: memref<1x128xf32, #tpu.memory_space<vmem>>, %arg5: memref<2x128x128xf32, #tpu.memory_space<vmem>>) attributes {dimension_semantics = [#tpu.dimension_semantics<parallel>], iteration_bounds = array<i64: 1>, scalar_prefetch = 0 : i64, scratch_operands = 0 : i64, tpu.core_type = #tpu.core_type<tc>, window_params = [{transform_indices = @transform_0, window_bounds = array<i64: 2, 128, 648>}, {pipeline_mode = #tpu.pipeline_mode<synchronous>, transform_indices = @transform_1, window_bounds = array<i64: 648, 128>}, {pipeline_mode = #tpu.pipeline_mode<synchronous>, transform_indices = @transform_2, window_bounds = array<i64: 1, 128>}, {pipeline_mode = #tpu.pipeline_mode<synchronous>, transform_indices = @transform_3, window_bounds = array<i64: 1, 128>}, {transform_indices = @transform_4, window_bounds = array<i64: 2, 128, 128>}]} {
    %c0 = arith.constant 0 : index
    %c0_0 = arith.constant 0 : index
    %0 = vector.load %arg2[%c0, %c0_0] : memref<648x128xf32, #tpu.memory_space<vmem>>, vector<648x128xf32>
    %c0_1 = arith.constant 0 : index
    %c0_2 = arith.constant 0 : index
    %1 = vector.load %arg3[%c0_1, %c0_2] : memref<1x128xf32, #tpu.memory_space<vmem>>, vector<1x128xf32>
    %c0_3 = arith.constant 0 : index
    %c0_4 = arith.constant 0 : index
    %2 = vector.load %arg4[%c0_3, %c0_4] : memref<1x128xf32, #tpu.memory_space<vmem>>, vector<1x128xf32>
    %c0_5 = arith.constant 0 : index
    %c0_6 = arith.constant 0 : index
    %c0_7 = arith.constant 0 : index
    %3 = vector.load %arg1[%c0_5, %c0_6, %c0_7] : memref<2x128x648xf32, #tpu.memory_space<vmem>>, vector<1x128x648xf32>
    %4 = vector.shape_cast %3 : vector<1x128x648xf32> to vector<128x648xf32>
    %cst = arith.constant dense<0.000000e+00> : vector<128x128xf32>
    %5 = tpu.matmul %4, %0, %cst {dimension_numbers = #tpu.dot_dimension_numbers<[1], [0], [0], [1], [0, 0, 1, 1], [], []>} : vector<128x648xf32>, vector<648x128xf32>, vector<128x128xf32> -> vector<128x128xf32>
    %cst_8 = arith.constant dense<0.000000e+00> : vector<128xf32>
    %6 = vector.multi_reduction <add>, %5, %cst_8 [0] : vector<128x128xf32> to vector<128xf32>
    %7 = vector.shape_cast %6 : vector<128xf32> to vector<1x128xf32>
    %8 = arith.mulf %5, %5 : vector<128x128xf32>
    %cst_9 = arith.constant dense<0.000000e+00> : vector<128xf32>
    %9 = vector.multi_reduction <add>, %8, %cst_9 [0] : vector<128x128xf32> to vector<128xf32>
    %10 = vector.shape_cast %9 : vector<128xf32> to vector<1x128xf32>
    %c8_i32 = arith.constant 8 : i32
    %11 = tpu.dynamic_rotate %7 by %c8_i32 dim 1 : vector<1x128xf32>, i32 -> vector<1x128xf32>
    %12 = arith.addf %7, %11 : vector<1x128xf32>
    %c16_i32 = arith.constant 16 : i32
    %13 = tpu.dynamic_rotate %12 by %c16_i32 dim 1 : vector<1x128xf32>, i32 -> vector<1x128xf32>
    %14 = arith.addf %12, %13 : vector<1x128xf32>
    %c32_i32 = arith.constant 32 : i32
    %15 = tpu.dynamic_rotate %14 by %c32_i32 dim 1 : vector<1x128xf32>, i32 -> vector<1x128xf32>
    %16 = arith.addf %14, %15 : vector<1x128xf32>
    %c64_i32 = arith.constant 64 : i32
    %17 = tpu.dynamic_rotate %16 by %c64_i32 dim 1 : vector<1x128xf32>, i32 -> vector<1x128xf32>
    %18 = arith.addf %16, %17 : vector<1x128xf32>
    %cst_10 = arith.constant 2.048000e+03 : f32
    %19 = vector.broadcast %cst_10 : f32 to vector<1x128xf32>
    %20 = arith.divf %18, %19 : vector<1x128xf32>
    %c8_i32_11 = arith.constant 8 : i32
    %21 = tpu.dynamic_rotate %10 by %c8_i32_11 dim 1 : vector<1x128xf32>, i32 -> vector<1x128xf32>
    %22 = arith.addf %10, %21 : vector<1x128xf32>
    %c16_i32_12 = arith.constant 16 : i32
    %23 = tpu.dynamic_rotate %22 by %c16_i32_12 dim 1 : vector<1x128xf32>, i32 -> vector<1x128xf32>
    %24 = arith.addf %22, %23 : vector<1x128xf32>
    %c32_i32_13 = arith.constant 32 : i32
    %25 = tpu.dynamic_rotate %24 by %c32_i32_13 dim 1 : vector<1x128xf32>, i32 -> vector<1x128xf32>
    %26 = arith.addf %24, %25 : vector<1x128xf32>
    %c64_i32_14 = arith.constant 64 : i32
    %27 = tpu.dynamic_rotate %26 by %c64_i32_14 dim 1 : vector<1x128xf32>, i32 -> vector<1x128xf32>
    %28 = arith.addf %26, %27 : vector<1x128xf32>
    %cst_15 = arith.constant 2.048000e+03 : f32
    %29 = vector.broadcast %cst_15 : f32 to vector<1x128xf32>
    %30 = arith.divf %28, %29 : vector<1x128xf32>
    %31 = arith.mulf %20, %20 : vector<1x128xf32>
    %32 = arith.subf %30, %31 : vector<1x128xf32>
    %cst_16 = arith.constant 9.99999974E-6 : f32
    %33 = vector.broadcast %cst_16 : f32 to vector<1x128xf32>
    %34 = arith.addf %32, %33 : vector<1x128xf32>
    %35 = math.rsqrt %34 : vector<1x128xf32>
    %36 = arith.mulf %35, %1 : vector<1x128xf32>
    %37 = arith.mulf %20, %36 : vector<1x128xf32>
    %38 = arith.subf %2, %37 : vector<1x128xf32>
    %39 = vector.broadcast %36 : vector<1x128xf32> to vector<128x128xf32>
    %40 = arith.mulf %5, %39 : vector<128x128xf32>
    %41 = vector.broadcast %38 : vector<1x128xf32> to vector<128x128xf32>
    %42 = arith.addf %40, %41 : vector<128x128xf32>
    %cst_17 = arith.constant 0.000000e+00 : f32
    %43 = vector.broadcast %cst_17 : f32 to vector<128x128xf32>
    %44 = arith.maximumf %42, %43 : vector<128x128xf32>
    %c0_18 = arith.constant 0 : index
    %c0_19 = arith.constant 0 : index
    %c0_20 = arith.constant 0 : index
    %45 = vector.load %arg5[%c0_18, %c0_19, %c0_20] : memref<2x128x128xf32, #tpu.memory_space<vmem>>, vector<1x128x128xf32>
    %46 = vector.shape_cast %45 : vector<1x128x128xf32> to vector<128x128xf32>
    %47 = vector.shape_cast %44 : vector<128x128xf32> to vector<1x128x128xf32>
    tpu.vector_store %arg5[%c0_18, %c0_19, %c0_20], %47 {strides = array<i32>} : memref<2x128x128xf32, #tpu.memory_space<vmem>>, vector<1x128x128xf32>,
    %c1 = arith.constant 1 : index
    %c0_21 = arith.constant 0 : index
    %c0_22 = arith.constant 0 : index
    %48 = vector.load %arg1[%c1, %c0_21, %c0_22] : memref<2x128x648xf32, #tpu.memory_space<vmem>>, vector<1x128x648xf32>
    %49 = vector.shape_cast %48 : vector<1x128x648xf32> to vector<128x648xf32>
    %cst_23 = arith.constant dense<0.000000e+00> : vector<128x128xf32>
    %50 = tpu.matmul %49, %0, %cst_23 {dimension_numbers = #tpu.dot_dimension_numbers<[1], [0], [0], [1], [0, 0, 1, 1], [], []>} : vector<128x648xf32>, vector<648x128xf32>, vector<128x128xf32> -> vector<128x128xf32>
    %cst_24 = arith.constant dense<0.000000e+00> : vector<128xf32>
    %51 = vector.multi_reduction <add>, %50, %cst_24 [0] : vector<128x128xf32> to vector<128xf32>
    %52 = vector.shape_cast %51 : vector<128xf32> to vector<1x128xf32>
    %53 = arith.mulf %50, %50 : vector<128x128xf32>
    %cst_25 = arith.constant dense<0.000000e+00> : vector<128xf32>
    %54 = vector.multi_reduction <add>, %53, %cst_25 [0] : vector<128x128xf32> to vector<128xf32>
    %55 = vector.shape_cast %54 : vector<128xf32> to vector<1x128xf32>
    %c8_i32_26 = arith.constant 8 : i32
    %56 = tpu.dynamic_rotate %52 by %c8_i32_26 dim 1 : vector<1x128xf32>, i32 -> vector<1x128xf32>
    %57 = arith.addf %52, %56 : vector<1x128xf32>
    %c16_i32_27 = arith.constant 16 : i32
    %58 = tpu.dynamic_rotate %57 by %c16_i32_27 dim 1 : vector<1x128xf32>, i32 -> vector<1x128xf32>
    %59 = arith.addf %57, %58 : vector<1x128xf32>
    %c32_i32_28 = arith.constant 32 : i32
    %60 = tpu.dynamic_rotate %59 by %c32_i32_28 dim 1 : vector<1x128xf32>, i32 -> vector<1x128xf32>
    %61 = arith.addf %59, %60 : vector<1x128xf32>
    %c64_i32_29 = arith.constant 64 : i32
    %62 = tpu.dynamic_rotate %61 by %c64_i32_29 dim 1 : vector<1x128xf32>, i32 -> vector<1x128xf32>
    %63 = arith.addf %61, %62 : vector<1x128xf32>
    %cst_30 = arith.constant 2.048000e+03 : f32
    %64 = vector.broadcast %cst_30 : f32 to vector<1x128xf32>
    %65 = arith.divf %63, %64 : vector<1x128xf32>
    %c8_i32_31 = arith.constant 8 : i32
    %66 = tpu.dynamic_rotate %55 by %c8_i32_31 dim 1 : vector<1x128xf32>, i32 -> vector<1x128xf32>
    %67 = arith.addf %55, %66 : vector<1x128xf32>
    %c16_i32_32 = arith.constant 16 : i32
    %68 = tpu.dynamic_rotate %67 by %c16_i32_32 dim 1 : vector<1x128xf32>, i32 -> vector<1x128xf32>
    %69 = arith.addf %67, %68 : vector<1x128xf32>
    %c32_i32_33 = arith.constant 32 : i32
    %70 = tpu.dynamic_rotate %69 by %c32_i32_33 dim 1 : vector<1x128xf32>, i32 -> vector<1x128xf32>
    %71 = arith.addf %69, %70 : vector<1x128xf32>
    %c64_i32_34 = arith.constant 64 : i32
    %72 = tpu.dynamic_rotate %71 by %c64_i32_34 dim 1 : vector<1x128xf32>, i32 -> vector<1x128xf32>
    %73 = arith.addf %71, %72 : vector<1x128xf32>
    %cst_35 = arith.constant 2.048000e+03 : f32
    %74 = vector.broadcast %cst_35 : f32 to vector<1x128xf32>
    %75 = arith.divf %73, %74 : vector<1x128xf32>
    %76 = arith.mulf %65, %65 : vector<1x128xf32>
    %77 = arith.subf %75, %76 : vector<1x128xf32>
    %cst_36 = arith.constant 9.99999974E-6 : f32
    %78 = vector.broadcast %cst_36 : f32 to vector<1x128xf32>
    %79 = arith.addf %77, %78 : vector<1x128xf32>
    %80 = math.rsqrt %79 : vector<1x128xf32>
    %81 = arith.mulf %80, %1 : vector<1x128xf32>
    %82 = arith.mulf %65, %81 : vector<1x128xf32>
    %83 = arith.subf %2, %82 : vector<1x128xf32>
    %84 = vector.broadcast %81 : vector<1x128xf32> to vector<128x128xf32>
    %85 = arith.mulf %50, %84 : vector<128x128xf32>
    %86 = vector.broadcast %83 : vector<1x128xf32> to vector<128x128xf32>
    %87 = arith.addf %85, %86 : vector<128x128xf32>
    %cst_37 = arith.constant 0.000000e+00 : f32
    %88 = vector.broadcast %cst_37 : f32 to vector<128x128xf32>
    %89 = arith.maximumf %87, %88 : vector<128x128xf32>
    %c1_38 = arith.constant 1 : index
    %c0_39 = arith.constant 0 : index
    %c0_40 = arith.constant 0 : index
    %90 = vector.load %arg5[%c1_38, %c0_39, %c0_40] : memref<2x128x128xf32, #tpu.memory_space<vmem>>, vector<1x128x128xf32>
    %91 = vector.shape_cast %90 : vector<1x128x128xf32> to vector<128x128xf32>
    %92 = vector.shape_cast %89 : vector<128x128xf32> to vector<1x128x128xf32>
    tpu.vector_store %arg5[%c1_38, %c0_39, %c0_40], %92 {strides = array<i32>} : memref<2x128x128xf32, #tpu.memory_space<vmem>>, vector<1x128x128xf32>,
    return
  }
  func.func @transform_0(%arg0: i32) -> (i32, i32, i32) {
    %c0_i32 = arith.constant 0 : i32
    %c0_i32_0 = arith.constant 0 : i32
    %c0_i32_1 = arith.constant 0 : i32
    return %arg0, %c0_i32, %c0_i32_0 : i32, i32, i32
  }
  func.func @transform_1(%arg0: i32) -> (i32, i32) {
    %c0_i32 = arith.constant 0 : i32
    %c0_i32_0 = arith.constant 0 : i32
    %c0_i32_1 = arith.constant 0 : i32
    return %c0_i32, %c0_i32_0 : i32, i32
  }
  func.func @transform_2(%arg0: i32) -> (i32, i32) {
    %c0_i32 = arith.constant 0 : i32
    %c0_i32_0 = arith.constant 0 : i32
    %c0_i32_1 = arith.constant 0 : i32
    return %c0_i32, %c0_i32_0 : i32, i32
  }
  func.func @transform_3(%arg0: i32) -> (i32, i32) {
    %c0_i32 = arith.constant 0 : i32
    %c0_i32_0 = arith.constant 0 : i32
    %c0_i32_1 = arith.constant 0 : i32
    return %c0_i32, %c0_i32_0 : i32, i32
  }
  func.func @transform_4(%arg0: i32) -> (i32, i32, i32) {
    %c0_i32 = arith.constant 0 : i32
    %c0_i32_0 = arith.constant 0 : i32
    %c0_i32_1 = arith.constant 0 : i32
    return %arg0, %c0_i32, %c0_i32_0 : i32, i32, i32
  }
}

</mosaic_0001>

<llo_original>
// kernel: tile.14
$region0: #{tile.14}
  %s0 = inlined_call_operand.vmem [shape: f32[16,8], index: 0, kind: input, shape index: {}]
  %s1 = inlined_call_operand.vmem [shape: f32[1,128], index: 1, kind: output, shape index: {}]
  $region1: #{tile.14} parent=0
    #allocation0 [shape = 'u8[4096]{0}', space=vmem, size = 0x1000, scoped, tag = 'scoped mem for output reshape']
    %v2 = vld [vmem:[%s0] sm:$0x1]
    %vm3 = vcmask 64512
    %4 = vst.msk [vmem:[#allocation0] sm:$0x1] %vm3, %v2
    %s5 = scalar_lea.vmem %s0, 15
    %v6 = vld [vmem:[%s5] sm:$0x1]
    %7 = vrot.lane.b32.xlu0 %v6, 120
    %v8 = vpop.permute.xlu0 %7
    %vm9 = vcmask 1048512
    %10 = vst.msk [vmem:[#allocation0] sm:$0x1] %vm9, %v8
    %s11 = scalar_lea.vmem %s0, 14
    %v12 = vld [vmem:[%s11] sm:$0x1]
    %13 = vrot.lane.b32.xlu0 %v12, 112
    %v14 = vpop.permute.xlu0 %13
    %vm15 = vcmask 982912
    %16 = vst.msk [vmem:[#allocation0] sm:$0x1] %vm15, %v14
    %s17 = scalar_lea.vmem %s0, 13
    %v18 = vld [vmem:[%s17] sm:$0x1]
    %19 = vrot.lane.b32.xlu0 %v18, 104
    %v20 = vpop.permute.xlu0 %19
    %vm21 = vcmask 917312
    %22 = vst.msk [vmem:[#allocation0] sm:$0x1] %vm21, %v20
    %s23 = scalar_lea.vmem %s0, 12
    %v24 = vld [vmem:[%s23] sm:$0x1]
    %25 = vrot.lane.b32.xlu0 %v24, 96
    %v26 = vpop.permute.xlu0 %25
    %vm27 = vcmask 851712
    %28 = vst.msk [vmem:[#allocation0] sm:$0x1] %vm27, %v26
    %s29 = scalar_lea.vmem %s0, 11
    %v30 = vld [vmem:[%s29] sm:$0x1]
    %31 = vrot.lane.b32.xlu0 %v30, 88
    %v32 = vpop.permute.xlu0 %31
    %vm33 = vcmask 786112
    %34 = vst.msk [vmem:[#allocation0] sm:$0x1] %vm33, %v32
    %s35 = scalar_lea.vmem %s0, 10
    %v36 = vld [vmem:[%s35] sm:$0x1]
    %37 = vrot.lane.b32.xlu0 %v36, 80
    %v38 = vpop.permute.xlu0 %37
    %vm39 = vcmask 720512
    %40 = vst.msk [vmem:[#allocation0] sm:$0x1] %vm39, %v38
    %s41 = scalar_lea.vmem %s0, 9
    %v42 = vld [vmem:[%s41] sm:$0x1]
    %43 = vrot.lane.b32.xlu0 %v42, 72
    %v44 = vpop.permute.xlu0 %43
    %vm45 = vcmask 654912
    %46 = vst.msk [vmem:[#allocation0] sm:$0x1] %vm45, %v44
    %s47 = scalar_lea.vmem %s0, 8
    %v48 = vld [vmem:[%s47] sm:$0x1]
    %49 = vrot.lane.b32.xlu0 %v48, 64
    %v50 = vpop.permute.xlu0 %49
    %vm51 = vcmask 589312
    %52 = vst.msk [vmem:[#allocation0] sm:$0x1] %vm51, %v50
    %s53 = scalar_lea.vmem %s0, 7
    %v54 = vld [vmem:[%s53] sm:$0x1]
    %55 = vrot.lane.b32.xlu0 %v54, 56
    %v56 = vpop.permute.xlu0 %55
    %vm57 = vcmask 523712
    %58 = vst.msk [vmem:[#allocation0] sm:$0x1] %vm57, %v56
    %s59 = scalar_lea.vmem %s0, 6
    %v60 = vld [vmem:[%s59] sm:$0x1]
    %61 = vrot.lane.b32.xlu0 %v60, 48
    %v62 = vpop.permute.xlu0 %61
    %vm63 = vcmask 458112
    %64 = vst.msk [vmem:[#allocation0] sm:$0x1] %vm63, %v62
    %s65 = scalar_lea.vmem %s0, 5
    %v66 = vld [vmem:[%s65] sm:$0x1]
    %67 = vrot.lane.b32.xlu0 %v66, 40
    %v68 = vpop.permute.xlu0 %67
    %vm69 = vcmask 392512
    %70 = vst.msk [vmem:[#allocation0] sm:$0x1] %vm69, %v68
    %s71 = scalar_lea.vmem %s0, 4
    %v72 = vld [vmem:[%s71] sm:$0x1]
    %73 = vrot.lane.b32.xlu0 %v72, 32
    %v74 = vpop.permute.xlu0 %73
    %vm75 = vcmask 326912
    %76 = vst.msk [vmem:[#allocation0] sm:$0x1] %vm75, %v74
    %s77 = scalar_lea.vmem %s0, 3
    %v78 = vld [vmem:[%s77] sm:$0x1]
    %79 = vrot.lane.b32.xlu0 %v78, 24
    %v80 = vpop.permute.xlu0 %79
    %vm81 = vcmask 261312
    %82 = vst.msk [vmem:[#allocation0] sm:$0x1] %vm81, %v80
    %s83 = scalar_lea.vmem %s0, 2
    %v84 = vld [vmem:[%s83] sm:$0x1]
    %85 = vrot.lane.b32.xlu0 %v84, 16
    %v86 = vpop.permute.xlu0 %85
    %vm87 = vcmask 195712
    %88 = vst.msk [vmem:[#allocation0] sm:$0x1] %vm87, %v86
    %s89 = scalar_lea.vmem %s0, 1
    %v90 = vld [vmem:[%s89] sm:$0x1]
    %91 = vrot.lane.b32.xlu0 %v90, 8
    %v92 = vpop.permute.xlu0 %91
    %vm93 = vcmask 130112
    %94 = vst.msk [vmem:[#allocation0] sm:$0x1] %vm93, %v92
    %s96 = sshllo.u32 0, 1
    %v98 = vld [vmem:[#allocation0] sm:%s96]
    %s99 = sshllo.u32 0, 1
    %100 = vst [vmem:[%s1] sm:%s99] %v98

// kernel: tile.13
$region0: #{tile.13}
  #allocation2 [shape = 's32[1]{0}', space=sflag, size = 0x4, scoped, tag = 'scoped memory for tile.13']
  %s0 = inlined_call_operand.hbm [shape: f32[8], index: 0, kind: input, shape index: {}]
  %s1 = inlined_call_operand.vmem [shape: f32[16,8], index: 1, kind: output, shape index: {}]
  $region1: #{tile.13} parent=0
    #allocation0 [shape = 'u8[512]{0}', space=vmem, size = 0x400, scoped, tag = 'operand span for operand 0']
    #allocation1 [shape = 's32[1]{0}', space=sflag, size = 0x4, scoped, tag = 'scoped memory for tile.13']
    %2 = vsyncpa [#allocation1], 0
    // Predicated region
    $region2: #{tile.13} parent=1 // pred_check
      _
    $region3: #{tile.13} parent=1 // pred_check_branch
      %4 = sbr.rel (0) target = $region5
    $region4: #{tile.13} parent=1 // pred_region
      %s6 = ssub.s32 16, 16
      %7 = vsyncadd [#allocation1], %s6
      %s9 = sshll.u32 [#allocation0], 4
      %s10 = int_to_ptr.vmem [resolvable:$true] %s9
      %12 = dma.hbm_to_vmem [thread:$0]  %s0, 16, %s10, [#allocation1]
    $region5: #{tile.13} parent=1 // pred_fallthru
      _
    // Predicated region
    $region6: #{tile.13} parent=1 // pred_check
      _
    $region7: #{tile.13} parent=1 // pred_check_branch
      %14 = sbr.rel (0) target = $region9
    $region8: #{tile.13} parent=1 // pred_region
      %15 = dma.done [#allocation1], 16
    $region9: #{tile.13} parent=1 // pred_fallthru
      _
    %v16 = vld [vmem:[#allocation0] ss:$0 sm:$0xff]
    %17 = vst [vmem:[%s1] sm:$0xff] %v16
    %s18 = scalar_lea.vmem %s1, 8
    %19 = vst [vmem:[%s18] sm:$0xff] %v16
    %20 = vsyncpa [#allocation1], 1

// kernel: conv_block_forward.1
$region0: #{conv_block_forward.1}
  #allocation0 [shape = 'u32[]', space=smem, size = 0x4, offset = 0x4, fixed_abs, tag = 'smem constant byte address 0x4 - core index']
  #allocation1 [shape = 'u32[144,128]{1,0:T(1,128)}', space=vmem, size = 0x12000, scoped, tag = 'internal scratch']
  %s0 = inlined_call_operand.vmem [shape: f32[2,128,648], index: 0, kind: input, shape index: {}]
  %s1 = inlined_call_operand.vmem [shape: f32[648,128], index: 1, kind: input, shape index: {}]
  %s2 = inlined_call_operand.vmem [shape: f32[1,128], index: 2, kind: input, shape index: {}]
  %s3 = inlined_call_operand.vmem [shape: f32[1,128], index: 3, kind: input, shape index: {}]
  %s4 = inlined_call_operand.vmem [shape: f32[2,128,128], index: 4, kind: output, shape index: {}]
  %s5 = sld [smem:[#allocation0]]
  $region26: #{conv_block_forward.1} parent=0
    _
  %s7 = ssub.s32 1, %s5
  %s8 = scalar_select 0, %s7, %s5
  // Predicated region
  $region2: #{conv_block_forward.1} parent=0 // pred_check
    _
  $region3: #{conv_block_forward.1} parent=0 // pred_check_branch
    %10 = sbr.rel (0) target = $region5
  $region4: #{conv_block_forward.1} parent=0 // pred_region
    _
  $region5: #{conv_block_forward.1} parent=0 // pred_fallthru
    _
  // Predicated region
  $region6: #{conv_block_forward.1} parent=0 // pred_check
    _
  $region7: #{conv_block_forward.1} parent=0 // pred_check_branch
    %12 = sbr.rel (0) target = $region9
  $region8: #{conv_block_forward.1} parent=0 // pred_region
    _
  $region9: #{conv_block_forward.1} parent=0 // pred_fallthru
    _
  // Predicated region
  $region10: #{conv_block_forward.1} parent=0 // pred_check
    _
  $region11: #{conv_block_forward.1} parent=0 // pred_check_branch
    %14 = sbr.rel (0) target = $region13
  $region12: #{conv_block_forward.1} parent=0 // pred_region
    _
  $region13: #{conv_block_forward.1} parent=0 // pred_fallthru
    _
  // Predicated region
  $region14: #{conv_block_forward.1} parent=0 // pred_check
    _
  $region15: #{conv_block_forward.1} parent=0 // pred_check_branch
    %16 = sbr.rel (0) target = $region17
  $region16: #{conv_block_forward.1} parent=0 // pred_region
    _
  $region17: #{conv_block_forward.1} parent=0 // pred_fallthru
    _
  %v17 = vld [vmem:[%s1] sm:$0xff]
  %v18 = vld [vmem:[%s1 + $0x8] sm:$0xff]
  %v19 = vld [vmem:[%s1 + $0x10] sm:$0xff]
  %v20 = vld [vmem:[%s1 + $0x18] sm:$0xff]
  %v21 = vld [vmem:[%s1 + $0x20] sm:$0xff]
  %v22 = vld [vmem:[%s1 + $0x28] sm:$0xff]
  %v23 = vld [vmem:[%s1 + $0x30] sm:$0xff]
  %v24 = vld [vmem:[%s1 + $0x38] sm:$0xff]
  %v25 = vld [vmem:[%s1 + $0x40] sm:$0xff]
  %v26 = vld [vmem:[%s1 + $0x48] sm:$0xff]
  %v27 = vld [vmem:[%s1 + $0x50] sm:$0xff]
  %v28 = vld [vmem:[%s1 + $0x58] sm:$0xff]
  %v29 = vld [vmem:[%s1 + $0x60] sm:$0xff]
  %v30 = vld [vmem:[%s1 + $0x68] sm:$0xff]
  %v31 = vld [vmem:[%s1 + $0x70] sm:$0xff]
  %v32 = vld [vmem:[%s1 + $0x78] sm:$0xff]
  %v33 = vld [vmem:[%s1 + $0x80] sm:$0xff]
  %v34 = vld [vmem:[%s1 + $0x88] sm:$0xff]
  %v35 = vld [vmem:[%s1 + $0x90] sm:$0xff]
  %v36 = vld [vmem:[%s1 + $0x98] sm:$0xff]
  %v37 = vld [vmem:[%s1 + $0xa0] sm:$0xff]
  %v38 = vld [vmem:[%s1 + $0xa8] sm:$0xff]
  %v39 = vld [vmem:[%s1 + $0xb0] sm:$0xff]
  %v40 = vld [vmem:[%s1 + $0xb8] sm:$0xff]
  %v41 = vld [vmem:[%s1 + $0xc0] sm:$0xff]
  %v42 = vld [vmem:[%s1 + $0xc8] sm:$0xff]
  %v43 = vld [vmem:[%s1 + $0xd0] sm:$0xff]
  %v44 = vld [vmem:[%s1 + $0xd8] sm:$0xff]
  %v45 = vld [vmem:[%s1 + $0xe0] sm:$0xff]
  %v46 = vld [vmem:[%s1 + $0xe8] sm:$0xff]
  %v47 = vld [vmem:[%s1 + $0xf0] sm:$0xff]
  %v48 = vld [vmem:[%s1 + $0xf8] sm:$0xff]
  %v49 = vld [vmem:[%s1 + $0x100] sm:$0xff]
  %v50 = vld [vmem:[%s1 + $0x108] sm:$0xff]
  %v51 = vld [vmem:[%s1 + $0x110] sm:$0xff]
  %v52 = vld [vmem:[%s1 + $0x118] sm:$0xff]
  %v53 = vld [vmem:[%s1 + $0x120] sm:$0xff]
  %v54 = vld [vmem:[%s1 + $0x128] sm:$0xff]
  %v55 = vld [vmem:[%s1 + $0x130] sm:$0xff]
  %v56 = vld [vmem:[%s1 + $0x138] sm:$0xff]
  %v57 = vld [vmem:[%s1 + $0x140] sm:$0xff]
  %v58 = vld [vmem:[%s1 + $0x148] sm:$0xff]
  %v59 = vld [vmem:[%s1 + $0x150] sm:$0xff]
  %v60 = vld [vmem:[%s1 + $0x158] sm:$0xff]
  %v61 = vld [vmem:[%s1 + $0x160] sm:$0xff]
  %v62 = vld [vmem:[%s1 + $0x168] sm:$0xff]
  %v63 = vld [vmem:[%s1 + $0x170] sm:$0xff]
  %v64 = vld [vmem:[%s1 + $0x178] sm:$0xff]
  %v65 = vld [vmem:[%s1 + $0x180] sm:$0xff]
  %v66 = vld [vmem:[%s1 + $0x188] sm:$0xff]
  %v67 = vld [vmem:[%s1 + $0x190] sm:$0xff]
  %v68 = vld [vmem:[%s1 + $0x198] sm:$0xff]
  %v69 = vld [vmem:[%s1 + $0x1a0] sm:$0xff]
  %v70 = vld [vmem:[%s1 + $0x1a8] sm:$0xff]
  %v71 = vld [vmem:[%s1 + $0x1b0] sm:$0xff]
  %v72 = vld [vmem:[%s1 + $0x1b8] sm:$0xff]
  %v73 = vld [vmem:[%s1 + $0x1c0] sm:$0xff]
  %v74 = vld [vmem:[%s1 + $0x1c8] sm:$0xff]
  %v75 = vld [vmem:[%s1 + $0x1d0] sm:$0xff]
  %v76 = vld [vmem:[%s1 + $0x1d8] sm:$0xff]
  %v77 = vld [vmem:[%s1 + $0x1e0] sm:$0xff]
  %v78 = vld [vmem:[%s1 + $0x1e8] sm:$0xff]
  %v79 = vld [vmem:[%s1 + $0x1f0] sm:$0xff]
  %v80 = vld [vmem:[%s1 + $0x1f8] sm:$0xff]
  %v81 = vld [vmem:[%s1 + $0x200] sm:$0xff]
  %v82 = vld [vmem:[%s1 + $0x208] sm:$0xff]
  %v83 = vld [vmem:[%s1 + $0x210] sm:$0xff]
  %v84 = vld [vmem:[%s1 + $0x218] sm:$0xff]
  %v85 = vld [vmem:[%s1 + $0x220] sm:$0xff]
  %v86 = vld [vmem:[%s1 + $0x228] sm:$0xff]
  %v87 = vld [vmem:[%s1 + $0x230] sm:$0xff]
  %v88 = vld [vmem:[%s1 + $0x238] sm:$0xff]
  %v89 = vld [vmem:[%s1 + $0x240] sm:$0xff]
  %v90 = vld [vmem:[%s1 + $0x248] sm:$0xff]
  %v91 = vld [vmem:[%s1 + $0x250] sm:$0xff]
  %v92 = vld [vmem:[%s1 + $0x258] sm:$0xff]
  %v93 = vld [vmem:[%s1 + $0x260] sm:$0xff]
  %v94 = vld [vmem:[%s1 + $0x268] sm:$0xff]
  %v95 = vld [vmem:[%s1 + $0x270] sm:$0xff]
  %v96 = vld [vmem:[%s1 + $0x278] sm:$0xff]
  %v97 = vld [vmem:[%s1 + $0x280] sm:$0xff]
  %v98 = vld [vmem:[%s2] sm:$0x1]
  %v99 = vld [vmem:[%s3] sm:$0x1]
  %v100 = vld [vmem:[%s0] sm:$0xff]
  %v101 = vld [vmem:[%s0 + $0x8] sm:$0xff]
  %v102 = vld [vmem:[%s0 + $0x10] sm:$0xff]
  %v103 = vld [vmem:[%s0 + $0x18] sm:$0xff]
  %v104 = vld [vmem:[%s0 + $0x20] sm:$0xff]
  %v105 = vld [vmem:[%s0 + $0x28] sm:$0xff]
  %v106 = vld [vmem:[%s0 + $0x30] sm:$0xff]
  %v107 = vld [vmem:[%s0 + $0x38] sm:$0xff]
  %v108 = vld [vmem:[%s0 + $0x40] sm:$0xff]
  %v109 = vld [vmem:[%s0 + $0x48] sm:$0xff]
  %v110 = vld [vmem:[%s0 + $0x50] sm:$0xff]
  %v111 = vld [vmem:[%s0 + $0x58] sm:$0xff]
  %v112 = vld [vmem:[%s0 + $0x60] sm:$0xff]
  %v113 = vld [vmem:[%s0 + $0x68] sm:$0xff]
  %v114 = vld [vmem:[%s0 + $0x70] sm:$0xff]
  %v115 = vld [vmem:[%s0 + $0x78] sm:$0xff]
  %v116 = vld [vmem:[%s0 + $0x80] sm:$0xff]
  %v117 = vld [vmem:[%s0 + $0x88] sm:$0xff]
  %v118 = vld [vmem:[%s0 + $0x90] sm:$0xff]
  %v119 = vld [vmem:[%s0 + $0x98] sm:$0xff]
  %v120 = vld [vmem:[%s0 + $0xa0] sm:$0xff]
  %v121 = vld [vmem:[%s0 + $0xa8] sm:$0xff]
  %v122 = vld [vmem:[%s0 + $0xb0] sm:$0xff]
  %v123 = vld [vmem:[%s0 + $0xb8] sm:$0xff]
  %v124 = vld [vmem:[%s0 + $0xc0] sm:$0xff]
  %v125 = vld [vmem:[%s0 + $0xc8] sm:$0xff]
  %v126 = vld [vmem:[%s0 + $0xd0] sm:$0xff]
  %v127 = vld [vmem:[%s0 + $0xd8] sm:$0xff]
  %v128 = vld [vmem:[%s0 + $0xe0] sm:$0xff]
  %v129 = vld [vmem:[%s0 + $0xe8] sm:$0xff]
  %v130 = vld [vmem:[%s0 + $0xf0] sm:$0xff]
  %v131 = vld [vmem:[%s0 + $0xf8] sm:$0xff]
  %v132 = vld [vmem:[%s0 + $0x100] sm:$0xff]
  %v133 = vld [vmem:[%s0 + $0x108] sm:$0xff]
  %v134 = vld [vmem:[%s0 + $0x110] sm:$0xff]
  %v135 = vld [vmem:[%s0 + $0x118] sm:$0xff]
  %v136 = vld [vmem:[%s0 + $0x120] sm:$0xff]
  %v137 = vld [vmem:[%s0 + $0x128] sm:$0xff]
  %v138 = vld [vmem:[%s0 + $0x130] sm:$0xff]
  %v139 = vld [vmem:[%s0 + $0x138] sm:$0xff]
  %v140 = vld [vmem:[%s0 + $0x140] sm:$0xff]
  %v141 = vld [vmem:[%s0 + $0x148] sm:$0xff]
  %v142 = vld [vmem:[%s0 + $0x150] sm:$0xff]
  %v143 = vld [vmem:[%s0 + $0x158] sm:$0xff]
  %v144 = vld [vmem:[%s0 + $0x160] sm:$0xff]
  %v145 = vld [vmem:[%s0 + $0x168] sm:$0xff]
  %v146 = vld [vmem:[%s0 + $0x170] sm:$0xff]
  %v147 = vld [vmem:[%s0 + $0x178] sm:$0xff]
  %v148 = vld [vmem:[%s0 + $0x180] sm:$0xff]
  %v149 = vld [vmem:[%s0 + $0x188] sm:$0xff]
  %v150 = vld [vmem:[%s0 + $0x190] sm:$0xff]
  %v151 = vld [vmem:[%s0 + $0x198] sm:$0xff]
  %v152 = vld [vmem:[%s0 + $0x1a0] sm:$0xff]
  %v153 = vld [vmem:[%s0 + $0x1a8] sm:$0xff]
  %v154 = vld [vmem:[%s0 + $0x1b0] sm:$0xff]
  %v155 = vld [vmem:[%s0 + $0x1b8] sm:$0xff]
  %v156 = vld [vmem:[%s0 + $0x1c0] sm:$0xff]
  %v157 = vld [vmem:[%s0 + $0x1c8] sm:$0xff]
  %v158 = vld [vmem:[%s0 + $0x1d0] sm:$0xff]
  %v159 = vld [vmem:[%s0 + $0x1d8] sm:$0xff]
  %v160 = vld [vmem:[%s0 + $0x1e0] sm:$0xff]
  %v161 = vld [vmem:[%s0 + $0x1e8] sm:$0xff]
  %v162 = vld [vmem:[%s0 + $0x1f0] sm:$0xff]
  %v163 = vld [vmem:[%s0 + $0x1f8] sm:$0xff]
  %v164 = vld [vmem:[%s0 + $0x200] sm:$0xff]
  %v165 = vld [vmem:[%s0 + $0x208] sm:$0xff]
  %v166 = vld [vmem:[%s0 + $0x210] sm:$0xff]
  %v167 = vld [vmem:[%s0 + $0x218] sm:$0xff]
  %v168 = vld [vmem:[%s0 + $0x220] sm:$0xff]
  %v169 = vld [vmem:[%s0 + $0x228] sm:$0xff]
  %v170 = vld [vmem:[%s0 + $0x230] sm:$0xff]
  %v171 = vld [vmem:[%s0 + $0x238] sm:$0xff]
  %v172 = vld [vmem:[%s0 + $0x240] sm:$0xff]
  %v173 = vld [vmem:[%s0 + $0x248] sm:$0xff]
  %v174 = vld [vmem:[%s0 + $0x250] sm:$0xff]
  %v175 = vld [vmem:[%s0 + $0x258] sm:$0xff]
  %v176 = vld [vmem:[%s0 + $0x260] sm:$0xff]
  %v177 = vld [vmem:[%s0 + $0x268] sm:$0xff]
  %v178 = vld [vmem:[%s0 + $0x270] sm:$0xff]
  %v179 = vld [vmem:[%s0 + $0x278] sm:$0xff]
  %v180 = vld [vmem:[%s0 + $0x280] sm:$0xff]
  %v181 = vld [vmem:[%s0 + $0x288] sm:$0xff]
  %v182 = vld [vmem:[%s0 + $0x290] sm:$0xff]
  %v183 = vld [vmem:[%s0 + $0x298] sm:$0xff]
  %v184 = vld [vmem:[%s0 + $0x2a0] sm:$0xff]
  %v185 = vld [vmem:[%s0 + $0x2a8] sm:$0xff]
  %v186 = vld [vmem:[%s0 + $0x2b0] sm:$0xff]
  %v187 = vld [vmem:[%s0 + $0x2b8] sm:$0xff]
  %v188 = vld [vmem:[%s0 + $0x2c0] sm:$0xff]
  %v189 = vld [vmem:[%s0 + $0x2c8] sm:$0xff]
  %v190 = vld [vmem:[%s0 + $0x2d0] sm:$0xff]
  %v191 = vld [vmem:[%s0 + $0x2d8] sm:$0xff]
  %v192 = vld [vmem:[%s0 + $0x2e0] sm:$0xff]
  %v193 = vld [vmem:[%s0 + $0x2e8] sm:$0xff]
  %v194 = vld [vmem:[%s0 + $0x2f0] sm:$0xff]
  %v195 = vld [vmem:[%s0 + $0x2f8] sm:$0xff]
  %vm196 = vcmask 64512
  %v198 = vsel %vm196, %v105, 0
  %v201 = vsel %vm196, %v111, 0
  %v204 = vsel %vm196, %v117, 0
  %v207 = vsel %vm196, %v123, 0
  %v210 = vsel %vm196, %v129, 0
  %v213 = vsel %vm196, %v135, 0
  %v216 = vsel %vm196, %v141, 0
  %v219 = vsel %vm196, %v147, 0
  %v222 = vsel %vm196, %v153, 0
  %v225 = vsel %vm196, %v159, 0
  %v228 = vsel %vm196, %v165, 0
  %v231 = vsel %vm196, %v171, 0
  %v234 = vsel %vm196, %v177, 0
  %v237 = vsel %vm196, %v183, 0
  %v240 = vsel %vm196, %v189, 0
  %v243 = vsel %vm196, %v195, 0
  %245 = vmatprep.subr.mxu0 0.0
  %246 = vmatpush1.msra.mxu0 %v17
  %247 = vmatprep.subr.mxu0 0.0
  %248 = vmatpush1.msra.mxu0 %v18
  %249 = vmatprep.subr.mxu0 0.0
  %250 = vmatpush1.msra.mxu0 %v19
  %251 = vmatprep.subr.mxu0 0.0
  %252 = vmatpush1.msra.mxu0 %v20
  %253 = vmatprep.subr.mxu0 0.0
  %254 = vmatpush1.msra.mxu0 %v21
  %255 = vmatprep.subr.mxu0 0.0
  %256 = vmatpush1.msra.mxu0 %v22
  %257 = vmatprep.subr.mxu0 0.0
  %258 = vmatpush1.msra.mxu0 %v23
  %259 = vmatprep.subr.mxu0 0.0
  %260 = vmatpush1.msra.mxu0 %v24
  %261 = vmatprep.subr.mxu0 0.0
  %262 = vmatpush1.msra.mxu0 %v25
  %263 = vmatprep.subr.mxu0 0.0
  %264 = vmatpush1.msra.mxu0 %v26
  %265 = vmatprep.subr.mxu0 0.0
  %266 = vmatpush1.msra.mxu0 %v27
  %267 = vmatprep.subr.mxu0 0.0
  %268 = vmatpush1.msra.mxu0 %v28
  %269 = vmatprep.subr.mxu0 0.0
  %270 = vmatpush1.msra.mxu0 %v29
  %271 = vmatprep.subr.mxu0 0.0
  %272 = vmatpush1.msra.mxu0 %v30
  %273 = vmatprep.subr.mxu0 0.0
  %274 = vmatpush1.msra.mxu0 %v31
  %275 = vmatprep.subr.mxu0 0.0
  %276 = vmatpush1.msra.mxu0 %v32
  %277 = vmatprep.subr.mxu0 0.0
  %278 = vmatpush1.msra.mxu0 %v33
  %279 = vmatprep.subr.mxu0 0.0
  %280 = vmatpush1.msra.mxu0 %v34
  %281 = vmatprep.subr.mxu0 0.0
  %282 = vmatpush1.msra.mxu0 %v35
  %283 = vmatprep.subr.mxu0 0.0
  %284 = vmatpush1.msra.mxu0 %v36
  %285 = vmatprep.subr.mxu0 0.0
  %286 = vmatpush1.msra.mxu0 %v37
  %287 = vmatprep.subr.mxu0 0.0
  %288 = vmatpush1.msra.mxu0 %v38
  %289 = vmatprep.subr.mxu0 0.0
  %290 = vmatpush1.msra.mxu0 %v39
  %291 = vmatprep.subr.mxu0 0.0
  %292 = vmatpush1.msra.mxu0 %v40
  %293 = vmatprep.subr.mxu0 0.0
  %294 = vmatpush1.msra.mxu0 %v41
  %295 = vmatprep.subr.mxu0 0.0
  %296 = vmatpush1.msra.mxu0 %v42
  %297 = vmatprep.subr.mxu0 0.0
  %298 = vmatpush1.msra.mxu0 %v43
  %299 = vmatprep.subr.mxu0 0.0
  %300 = vmatpush1.msra.mxu0 %v44
  %301 = vmatprep.subr.mxu0 0.0
  %302 = vmatpush1.msra.mxu0 %v45
  %303 = vmatprep.subr.mxu0 0.0
  %304 = vmatpush1.msra.mxu0 %v46
  %305 = vmatprep.subr.mxu0 0.0
  %306 = vmatpush1.msra.mxu0 %v47
  %307 = vmatprep.subr.mxu0 0.0
  %308 = vmatpush1.msra.mxu0 %v48
  %309 = vmatprep.mubr.f32.mxu0 %v101
  %310 = vmatmul.mubr.f32.gmra.mrb[0].mxu0 %v100
  %v311 = vpop.f32.mrb[0].mxu0
  %v312 = vadd.f32 0.0, %v311
  %v313 = vpop.f32.mrb[0].mxu0
  %314 = vmatprep.mubr.f32.mxu0 %v107
  %315 = vmatmul.mubr.f32.gmra.mrb[0].mxu0 %v106
  %v316 = vpop.f32.mrb[0].mxu0
  %v317 = vadd.f32 0.0, %v316
  %v318 = vpop.f32.mrb[0].mxu0
  %319 = vmatprep.mubr.f32.mxu0 %v113
  %320 = vmatmul.mubr.f32.gmra.mrb[0].mxu0 %v112
  %v321 = vpop.f32.mrb[0].mxu0
  %v322 = vadd.f32 0.0, %v321
  %v323 = vpop.f32.mrb[0].mxu0
  %324 = vmatprep.mubr.f32.mxu0 %v119
  %325 = vmatmul.mubr.f32.gmra.mrb[0].mxu0 %v118
  %v326 = vpop.f32.mrb[0].mxu0
  %v327 = vadd.f32 0.0, %v326
  %v328 = vpop.f32.mrb[0].mxu0
  %329 = vmatprep.mubr.f32.mxu0 %v125
  %330 = vmatmul.mubr.f32.gmra.mrb[0].mxu0 %v124
  %v331 = vpop.f32.mrb[0].mxu0
  %v332 = vadd.f32 0.0, %v331
  %v333 = vpop.f32.mrb[0].mxu0
  %334 = vmatprep.mubr.f32.mxu0 %v131
  %335 = vmatmul.mubr.f32.gmra.mrb[0].mxu0 %v130
  %v336 = vpop.f32.mrb[0].mxu0
  %v337 = vadd.f32 0.0, %v336
  %v338 = vpop.f32.mrb[0].mxu0
  %339 = vmatprep.mubr.f32.mxu0 %v137
  %340 = vmatmul.mubr.f32.gmra.mrb[0].mxu0 %v136
  %v341 = vpop.f32.mrb[0].mxu0
  %v342 = vadd.f32 0.0, %v341
  %v343 = vpop.f32.mrb[0].mxu0
  %344 = vmatprep.mubr.f32.mxu0 %v143
  %345 = vmatmul.mubr.f32.gmra.mrb[0].mxu0 %v142
  %v346 = vpop.f32.mrb[0].mxu0
  %v347 = vadd.f32 0.0, %v346
  %v348 = vpop.f32.mrb[0].mxu0
  %349 = vmatprep.mubr.f32.mxu0 %v149
  %350 = vmatmul.mubr.f32.gmra.mrb[0].mxu0 %v148
  %v351 = vpop.f32.mrb[0].mxu0
  %v352 = vadd.f32 0.0, %v351
  %v353 = vpop.f32.mrb[0].mxu0
  %354 = vmatprep.mubr.f32.mxu0 %v155
  %355 = vmatmul.mubr.f32.gmra.mrb[0].mxu0 %v154
  %v356 = vpop.f32.mrb[0].mxu0
  %v357 = vadd.f32 0.0, %v356
  %v358 = vpop.f32.mrb[0].mxu0
  %359 = vmatprep.mubr.f32.mxu0 %v161
  %360 = vmatmul.mubr.f32.gmra.mrb[0].mxu0 %v160
  %v361 = vpop.f32.mrb[0].mxu0
  %v362 = vadd.f32 0.0, %v361
  %v363 = vpop.f32.mrb[0].mxu0
  %364 = vmatprep.mubr.f32.mxu0 %v167
  %365 = vmatmul.mubr.f32.gmra.mrb[0].mxu0 %v166
  %v366 = vpop.f32.mrb[0].mxu0
  %v367 = vadd.f32 0.0, %v366
  %v368 = vpop.f32.mrb[0].mxu0
  %369 = vmatprep.mubr.f32.mxu0 %v173
  %370 = vmatmul.mubr.f32.gmra.mrb[0].mxu0 %v172
  %v371 = vpop.f32.mrb[0].mxu0
  %v372 = vadd.f32 0.0, %v371
  %v373 = vpop.f32.mrb[0].mxu0
  %374 = vmatprep.mubr.f32.mxu0 %v179
  %375 = vmatmul.mubr.f32.gmra.mrb[0].mxu0 %v178
  %v376 = vpop.f32.mrb[0].mxu0
  %v377 = vadd.f32 0.0, %v376
  %v378 = vpop.f32.mrb[0].mxu0
  %379 = vmatprep.mubr.f32.mxu0 %v185
  %380 = vmatmul.mubr.f32.gmra.mrb[0].mxu0 %v184
  %v381 = vpop.f32.mrb[0].mxu0
  %v382 = vadd.f32 0.0, %v381
  %v383 = vpop.f32.mrb[0].mxu0
  %384 = vmatprep.mubr.f32.mxu0 %v191
  %385 = vmatmul.mubr.f32.gmra.mrb[0].mxu0 %v190
  %v386 = vpop.f32.mrb[0].mxu0
  %v387 = vadd.f32 0.0, %v386
  %v388 = vpop.f32.mrb[0].mxu0
  %389 = vdwg.mxu0
  %390 = vmatprep.subr.mxu0 0.0
  %391 = vmatpush1.msra.mxu0 %v49
  %392 = vmatprep.subr.mxu0 0.0
  %393 = vmatpush1.msra.mxu0 %v50
  %394 = vmatprep.subr.mxu0 0.0
  %395 = vmatpush1.msra.mxu0 %v51
  %396 = vmatprep.subr.mxu0 0.0
  %397 = vmatpush1.msra.mxu0 %v52
  %398 = vmatprep.subr.mxu0 0.0
  %399 = vmatpush1.msra.mxu0 %v53
  %400 = vmatprep.subr.mxu0 0.0
  %401 = vmatpush1.msra.mxu0 %v54
  %402 = vmatprep.subr.mxu0 0.0
  %403 = vmatpush1.msra.mxu0 %v55
  %404 = vmatprep.subr.mxu0 0.0
  %405 = vmatpush1.msra.mxu0 %v56
  %406 = vmatprep.subr.mxu0 0.0
  %407 = vmatpush1.msra.mxu0 %v57
  %408 = vmatprep.subr.mxu0 0.0
  %409 = vmatpush1.msra.mxu0 %v58
  %410 = vmatprep.subr.mxu0 0.0
  %411 = vmatpush1.msra.mxu0 %v59
  %412 = vmatprep.subr.mxu0 0.0
  %413 = vmatpush1.msra.mxu0 %v60
  %414 = vmatprep.subr.mxu0 0.0
  %415 = vmatpush1.msra.mxu0 %v61
  %416 = vmatprep.subr.mxu0 0.0
  %417 = vmatpush1.msra.mxu0 %v62
  %418 = vmatprep.subr.mxu0 0.0
  %419 = vmatpush1.msra.mxu0 %v63
  %420 = vmatprep.subr.mxu0 0.0
  %421 = vmatpush1.msra.mxu0 %v64
  %422 = vmatprep.subr.mxu0 0.0
  %423 = vmatpush1.msra.mxu0 %v65
  %424 = vmatprep.subr.mxu0 0.0
  %425 = vmatpush1.msra.mxu0 %v66
  %426 = vmatprep.subr.mxu0 0.0
  %427 = vmatpush1.msra.mxu0 %v67
  %428 = vmatprep.subr.mxu0 0.0
  %429 = vmatpush1.msra.mxu0 %v68
  %430 = vmatprep.subr.mxu0 0.0
  %431 = vmatpush1.msra.mxu0 %v69
  %432 = vmatprep.subr.mxu0 0.0
  %433 = vmatpush1.msra.mxu0 %v70
  %434 = vmatprep.subr.mxu0 0.0
  %435 = vmatpush1.msra.mxu0 %v71
  %436 = vmatprep.subr.mxu0 0.0
  %437 = vmatpush1.msra.mxu0 %v72
  %438 = vmatprep.subr.mxu0 0.0
  %439 = vmatpush1.msra.mxu0 %v73
  %440 = vmatprep.subr.mxu0 0.0
  %441 = vmatpush1.msra.mxu0 %v74
  %442 = vmatprep.subr.mxu0 0.0
  %443 = vmatpush1.msra.mxu0 %v75
  %444 = vmatprep.subr.mxu0 0.0
  %445 = vmatpush1.msra.mxu0 %v76
  %446 = vmatprep.subr.mxu0 0.0
  %447 = vmatpush1.msra.mxu0 %v77
  %448 = vmatprep.subr.mxu0 0.0
  %449 = vmatpush1.msra.mxu0 %v78
  %450 = vmatprep.subr.mxu0 0.0
  %451 = vmatpush1.msra.mxu0 %v79
  %452 = vmatprep.subr.mxu0 0.0
  %453 = vmatpush1.msra.mxu0 %v80
  %454 = vmatprep.mubr.f32.mxu0 %v103
  %455 = vmatmul.mubr.f32.gmra.mrb[0].mxu0 %v102
  %v456 = vpop.f32.mrb[0].mxu0
  %v457 = vadd.f32 %v312, %v456
  %v458 = vpop.f32.mrb[0].mxu0
  %459 = vmatprep.mubr.f32.mxu0 %v109
  %460 = vmatmul.mubr.f32.gmra.mrb[0].mxu0 %v108
  %v461 = vpop.f32.mrb[0].mxu0
  %v462 = vadd.f32 %v317, %v461
  %v463 = vpop.f32.mrb[0].mxu0
  %464 = vmatprep.mubr.f32.mxu0 %v115
  %465 = vmatmul.mubr.f32.gmra.mrb[0].mxu0 %v114
  %v466 = vpop.f32.mrb[0].mxu0
  %v467 = vadd.f32 %v322, %v466
  %v468 = vpop.f32.mrb[0].mxu0
  %469 = vmatprep.mubr.f32.mxu0 %v121
  %470 = vmatmul.mubr.f32.gmra.mrb[0].mxu0 %v120
  %v471 = vpop.f32.mrb[0].mxu0
  %v472 = vadd.f32 %v327, %v471
  %v473 = vpop.f32.mrb[0].mxu0
  %474 = vmatprep.mubr.f32.mxu0 %v127
  %475 = vmatmul.mubr.f32.gmra.mrb[0].mxu0 %v126
  %v476 = vpop.f32.mrb[0].mxu0
  %v477 = vadd.f32 %v332, %v476
  %v478 = vpop.f32.mrb[0].mxu0
  %479 = vmatprep.mubr.f32.mxu0 %v133
  %480 = vmatmul.mubr.f32.gmra.mrb[0].mxu0 %v132
  %v481 = vpop.f32.mrb[0].mxu0
  %v482 = vadd.f32 %v337, %v481
  %v483 = vpop.f32.mrb[0].mxu0
  %484 = vmatprep.mubr.f32.mxu0 %v139
  %485 = vmatmul.mubr.f32.gmra.mrb[0].mxu0 %v138
  %v486 = vpop.f32.mrb[0].mxu0
  %v487 = vadd.f32 %v342, %v486
  %v488 = vpop.f32.mrb[0].mxu0
  %489 = vmatprep.mubr.f32.mxu0 %v145
  %490 = vmatmul.mubr.f32.gmra.mrb[0].mxu0 %v144
  %v491 = vpop.f32.mrb[0].mxu0
  %v492 = vadd.f32 %v347, %v491
  %v493 = vpop.f32.mrb[0].mxu0
  %494 = vmatprep.mubr.f32.mxu0 %v151
  %495 = vmatmul.mubr.f32.gmra.mrb[0].mxu0 %v150
  %v496 = vpop.f32.mrb[0].mxu0
  %v497 = vadd.f32 %v352, %v496
  %v498 = vpop.f32.mrb[0].mxu0
  %499 = vmatprep.mubr.f32.mxu0 %v157
  %500 = vmatmul.mubr.f32.gmra.mrb[0].mxu0 %v156
  %v501 = vpop.f32.mrb[0].mxu0
  %v502 = vadd.f32 %v357, %v501
  %v503 = vpop.f32.mrb[0].mxu0
  %504 = vmatprep.mubr.f32.mxu0 %v163
  %505 = vmatmul.mubr.f32.gmra.mrb[0].mxu0 %v162
  %v506 = vpop.f32.mrb[0].mxu0
  %v507 = vadd.f32 %v362, %v506
  %v508 = vpop.f32.mrb[0].mxu0
  %509 = vmatprep.mubr.f32.mxu0 %v169
  %510 = vmatmul.mubr.f32.gmra.mrb[0].mxu0 %v168
  %v511 = vpop.f32.mrb[0].mxu0
  %v512 = vadd.f32 %v367, %v511
  %v513 = vpop.f32.mrb[0].mxu0
  %514 = vmatprep.mubr.f32.mxu0 %v175
  %515 = vmatmul.mubr.f32.gmra.mrb[0].mxu0 %v174
  %v516 = vpop.f32.mrb[0].mxu0
  %v517 = vadd.f32 %v372, %v516
  %v518 = vpop.f32.mrb[0].mxu0
  %519 = vmatprep.mubr.f32.mxu0 %v181
  %520 = vmatmul.mubr.f32.gmra.mrb[0].mxu0 %v180
  %v521 = vpop.f32.mrb[0].mxu0
  %v522 = vadd.f32 %v377, %v521
  %v523 = vpop.f32.mrb[0].mxu0
  %524 = vmatprep.mubr.f32.mxu0 %v187
  %525 = vmatmul.mubr.f32.gmra.mrb[0].mxu0 %v186
  %v526 = vpop.f32.mrb[0].mxu0
  %v527 = vadd.f32 %v382, %v526
  %v528 = vpop.f32.mrb[0].mxu0
  %529 = vmatprep.mubr.f32.mxu0 %v193
  %530 = vmatmul.mubr.f32.gmra.mrb[0].mxu0 %v192
  %v531 = vpop.f32.mrb[0].mxu0
  %v532 = vadd.f32 %v387, %v531
  %v533 = vpop.f32.mrb[0].mxu0
  %534 = vdwg.mxu0
  %535 = vmatprep.subr.mxu0 0.0
  %536 = vmatpush1.msra.mxu0 %v81
  %537 = vmatprep.subr.mxu0 0.0
  %538 = vmatpush1.msra.mxu0 %v82
  %539 = vmatprep.subr.mxu0 0.0
  %540 = vmatpush1.msra.mxu0 %v83
  %541 = vmatprep.subr.mxu0 0.0
  %542 = vmatpush1.msra.mxu0 %v84
  %543 = vmatprep.subr.mxu0 0.0
  %544 = vmatpush1.msra.mxu0 %v85
  %545 = vmatprep.subr.mxu0 0.0
  %546 = vmatpush1.msra.mxu0 %v86
  %547 = vmatprep.subr.mxu0 0.0
  %548 = vmatpush1.msra.mxu0 %v87
  %549 = vmatprep.subr.mxu0 0.0
  %550 = vmatpush1.msra.mxu0 %v88
  %551 = vmatprep.subr.mxu0 0.0
  %552 = vmatpush1.msra.mxu0 %v89
  %553 = vmatprep.subr.mxu0 0.0
  %554 = vmatpush1.msra.mxu0 %v90
  %555 = vmatprep.subr.mxu0 0.0
  %556 = vmatpush1.msra.mxu0 %v91
  %557 = vmatprep.subr.mxu0 0.0
  %558 = vmatpush1.msra.mxu0 %v92
  %559 = vmatprep.subr.mxu0 0.0
  %560 = vmatpush1.msra.mxu0 %v93
  %561 = vmatprep.subr.mxu0 0.0
  %562 = vmatpush1.msra.mxu0 %v94
  %563 = vmatprep.subr.mxu0 0.0
  %564 = vmatpush1.msra.mxu0 %v95
  %565 = vmatprep.subr.mxu0 0.0
  %566 = vmatpush1.msra.mxu0 %v96
  %567 = vmatprep.subr.mxu0 0.0
  %568 = vmatpush1.msra.mxu0 %v97
  %569 = vmatprep.subr.mxu0 0.0
  %570 = vmatpush1.msra.mxu0 0.0
  %571 = vmatprep.subr.mxu0 0.0
  %572 = vmatpush1.msra.mxu0 0.0
  %573 = vmatprep.subr.mxu0 0.0
  %574 = vmatpush1.msra.mxu0 0.0
  %575 = vmatprep.subr.mxu0 0.0
  %576 = vmatpush1.msra.mxu0 0.0
  %577 = vmatprep.subr.mxu0 0.0
  %578 = vmatpush1.msra.mxu0 0.0
  %579 = vmatprep.subr.mxu0 0.0
  %580 = vmatpush1.msra.mxu0 0.0
  %581 = vmatprep.subr.mxu0 0.0
  %582 = vmatpush1.msra.mxu0 0.0
  %583 = vmatprep.subr.mxu0 0.0
  %584 = vmatpush1.msra.mxu0 0.0
  %585 = vmatprep.subr.mxu0 0.0
  %586 = vmatpush1.msra.mxu0 0.0
  %587 = vmatprep.subr.mxu0 0.0
  %588 = vmatpush1.msra.mxu0 0.0
  %589 = vmatprep.subr.mxu0 0.0
  %590 = vmatpush1.msra.mxu0 0.0
  %591 = vmatprep.subr.mxu0 0.0
  %592 = vmatpush1.msra.mxu0 0.0
  %593 = vmatprep.subr.mxu0 0.0
  %594 = vmatpush1.msra.mxu0 0.0
  %595 = vmatprep.subr.mxu0 0.0
  %596 = vmatpush1.msra.mxu0 0.0
  %597 = vmatprep.subr.mxu0 0.0
  %598 = vmatpush1.msra.mxu0 0.0
  %599 = vmatprep.mubr.f32.mxu0 %v198
  %600 = vmatmul.mubr.f32.gmra.mrb[0].mxu0 %v104
  %v601 = vpop.f32.mrb[0].mxu0
  %v602 = vadd.f32 %v457, %v601
  %v603 = vpop.f32.mrb[0].mxu0
  %604 = vmatprep.mubr.f32.mxu0 %v201
  %605 = vmatmul.mubr.f32.gmra.mrb[0].mxu0 %v110
  %v606 = vpop.f32.mrb[0].mxu0
  %v607 = vadd.f32 %v462, %v606
  %v608 = vpop.f32.mrb[0].mxu0
  %609 = vmatprep.mubr.f32.mxu0 %v204
  %610 = vmatmul.mubr.f32.gmra.mrb[0].mxu0 %v116
  %v611 = vpop.f32.mrb[0].mxu0
  %v612 = vadd.f32 %v467, %v611
  %v613 = vpop.f32.mrb[0].mxu0
  %614 = vmatprep.mubr.f32.mxu0 %v207
  %615 = vmatmul.mubr.f32.gmra.mrb[0].mxu0 %v122
  %v616 = vpop.f32.mrb[0].mxu0
  %v617 = vadd.f32 %v472, %v616
  %v618 = vpop.f32.mrb[0].mxu0
  %619 = vmatprep.mubr.f32.mxu0 %v210
  %620 = vmatmul.mubr.f32.gmra.mrb[0].mxu0 %v128
  %v621 = vpop.f32.mrb[0].mxu0
  %v622 = vadd.f32 %v477, %v621
  %v623 = vpop.f32.mrb[0].mxu0
  %624 = vmatprep.mubr.f32.mxu0 %v213
  %625 = vmatmul.mubr.f32.gmra.mrb[0].mxu0 %v134
  %v626 = vpop.f32.mrb[0].mxu0
  %v627 = vadd.f32 %v482, %v626
  %v628 = vpop.f32.mrb[0].mxu0
  %629 = vmatprep.mubr.f32.mxu0 %v216
  %630 = vmatmul.mubr.f32.gmra.mrb[0].mxu0 %v140
  %v631 = vpop.f32.mrb[0].mxu0
  %v632 = vadd.f32 %v487, %v631
  %v633 = vpop.f32.mrb[0].mxu0
  %634 = vmatprep.mubr.f32.mxu0 %v219
  %635 = vmatmul.mubr.f32.gmra.mrb[0].mxu0 %v146
  %v636 = vpop.f32.mrb[0].mxu0
  %v637 = vadd.f32 %v492, %v636
  %v638 = vpop.f32.mrb[0].mxu0
  %639 = vmatprep.mubr.f32.mxu0 %v222
  %640 = vmatmul.mubr.f32.gmra.mrb[0].mxu0 %v152
  %v641 = vpop.f32.mrb[0].mxu0
  %v642 = vadd.f32 %v497, %v641
  %v643 = vpop.f32.mrb[0].mxu0
  %644 = vmatprep.mubr.f32.mxu0 %v225
  %645 = vmatmul.mubr.f32.gmra.mrb[0].mxu0 %v158
  %v646 = vpop.f32.mrb[0].mxu0
  %v647 = vadd.f32 %v502, %v646
  %v648 = vpop.f32.mrb[0].mxu0
  %649 = vmatprep.mubr.f32.mxu0 %v228
  %650 = vmatmul.mubr.f32.gmra.mrb[0].mxu0 %v164
  %v651 = vpop.f32.mrb[0].mxu0
  %v652 = vadd.f32 %v507, %v651
  %v653 = vpop.f32.mrb[0].mxu0
  %654 = vmatprep.mubr.f32.mxu0 %v231
  %655 = vmatmul.mubr.f32.gmra.mrb[0].mxu0 %v170
  %v656 = vpop.f32.mrb[0].mxu0
  %v657 = vadd.f32 %v512, %v656
  %v658 = vpop.f32.mrb[0].mxu0
  %659 = vmatprep.mubr.f32.mxu0 %v234
  %660 = vmatmul.mubr.f32.gmra.mrb[0].mxu0 %v176
  %v661 = vpop.f32.mrb[0].mxu0
  %v662 = vadd.f32 %v517, %v661
  %v663 = vpop.f32.mrb[0].mxu0
  %664 = vmatprep.mubr.f32.mxu0 %v237
  %665 = vmatmul.mubr.f32.gmra.mrb[0].mxu0 %v182
  %v666 = vpop.f32.mrb[0].mxu0
  %v667 = vadd.f32 %v522, %v666
  %v668 = vpop.f32.mrb[0].mxu0
  %669 = vmatprep.mubr.f32.mxu0 %v240
  %670 = vmatmul.mubr.f32.gmra.mrb[0].mxu0 %v188
  %v671 = vpop.f32.mrb[0].mxu0
  %v672 = vadd.f32 %v527, %v671
  %v673 = vpop.f32.mrb[0].mxu0
  %674 = vmatprep.mubr.f32.mxu0 %v243
  %675 = vmatmul.mubr.f32.gmra.mrb[0].mxu0 %v194
  %v676 = vpop.f32.mrb[0].mxu0
  %v677 = vadd.f32 %v532, %v676
  %v678 = vpop.f32.mrb[0].mxu0
  %679 = vdwg.mxu0
  %v680 = vadd.f32 %v602, %v607
  %v681 = vadd.f32 %v680, %v612
  %v682 = vadd.f32 %v681, %v617
  %v683 = vadd.f32 %v682, %v622
  %v684 = vadd.f32 %v683, %v627
  %v685 = vadd.f32 %v684, %v632
  %v686 = vadd.f32 %v685, %v637
  %v687 = vadd.f32 %v686, %v642
  %v688 = vadd.f32 %v687, %v647
  %v689 = vadd.f32 %v688, %v652
  %v690 = vadd.f32 %v689, %v657
  %v691 = vadd.f32 %v690, %v662
  %v692 = vadd.f32 %v691, %v667
  %v693 = vadd.f32 %v692, %v672
  %v694 = vadd.f32 %v693, %v677
  %v695 = vrot.slane %v694, 4
  %v696 = vadd.f32 %v694, %v695
  %v697 = vrot.slane %v696, 2
  %v698 = vadd.f32 %v696, %v697
  %v699 = vrot.slane %v698, 1
  %v700 = vadd.f32 %v698, %v699
  %v701 = vmul.f32 %v602, %v602
  %v702 = vmul.f32 %v607, %v607
  %v703 = vmul.f32 %v612, %v612
  %v704 = vmul.f32 %v617, %v617
  %v705 = vmul.f32 %v622, %v622
  %v706 = vmul.f32 %v627, %v627
  %v707 = vmul.f32 %v632, %v632
  %v708 = vmul.f32 %v637, %v637
  %v709 = vmul.f32 %v642, %v642
  %v710 = vmul.f32 %v647, %v647
  %v711 = vmul.f32 %v652, %v652
  %v712 = vmul.f32 %v657, %v657
  %v713 = vmul.f32 %v662, %v662
  %v714 = vmul.f32 %v667, %v667
  %v715 = vmul.f32 %v672, %v672
  %v716 = vmul.f32 %v677, %v677
  %v717 = vadd.f32 %v701, %v702
  %v718 = vadd.f32 %v717, %v703
  %v719 = vadd.f32 %v718, %v704
  %v720 = vadd.f32 %v719, %v705
  %v721 = vadd.f32 %v720, %v706
  %v722 = vadd.f32 %v721, %v707
  %v723 = vadd.f32 %v722, %v708
  %v724 = vadd.f32 %v723, %v709
  %v725 = vadd.f32 %v724, %v710
  %v726 = vadd.f32 %v725, %v711
  %v727 = vadd.f32 %v726, %v712
  %v728 = vadd.f32 %v727, %v713
  %v729 = vadd.f32 %v728, %v714
  %v730 = vadd.f32 %v729, %v715
  %v731 = vadd.f32 %v730, %v716
  %v732 = vrot.slane %v731, 4
  %v733 = vadd.f32 %v731, %v732
  %v734 = vrot.slane %v733, 2
  %v735 = vadd.f32 %v733, %v734
  %v736 = vrot.slane %v735, 1
  %v737 = vadd.f32 %v735, %v736
  %738 = vrot.lane.b32.xlu0 %v700, 8
  %v739 = vpop.permute.xlu0 %738
  %v740 = vadd.f32 %v700, %v739
  %741 = vrot.lane.b32.xlu0 %v740, 16
  %v742 = vpop.permute.xlu0 %741
  %v743 = vadd.f32 %v740, %v742
  %744 = vrot.lane.b32.xlu0 %v743, 32
  %v745 = vpop.permute.xlu0 %744
  %v746 = vadd.f32 %v743, %v745
  %747 = vrot.lane.b32.xlu0 %v746, 64
  %v748 = vpop.permute.xlu0 %747
  %v749 = vadd.f32 %v746, %v748
  %v750 = vrcp.pop 2048.0
  %v751 = vmul.f32 %v749, %v750
  %752 = vrot.lane.b32.xlu0 %v737, 8
  %v753 = vpop.permute.xlu0 %752
  %v754 = vadd.f32 %v737, %v753
  %755 = vrot.lane.b32.xlu0 %v754, 16
  %v756 = vpop.permute.xlu0 %755
  %v757 = vadd.f32 %v754, %v756
  %758 = vrot.lane.b32.xlu0 %v757, 32
  %v759 = vpop.permute.xlu0 %758
  %v760 = vadd.f32 %v757, %v759
  %761 = vrot.lane.b32.xlu0 %v760, 64
  %v762 = vpop.permute.xlu0 %761
  %v763 = vadd.f32 %v760, %v762
  %v764 = vmul.f32 %v763, %v750
  %v765 = vmul.f32 %v751, %v751
  %v766 = vsub.f32 %v764, %v765
  %v767 = vadd.f32 %v766, 1e-05
  %v768 = vrsqrt.pop %v767
  %v769 = vmul.f32 %v768, %v98
  %v770 = vmul.f32 %v751, %v769
  %v771 = vsub.f32 %v99, %v770
  %v772 = vlaneseq
  %v773 = vshrl.u32 %v772, 7
  %v774 = vsub.s32 0, %v773
  %v775 = vrot.slane %v769, %v774
  %v776 = vmul.f32 %v602, %v775
  %v777 = vmul.f32 %v607, %v775
  %v778 = vmul.f32 %v612, %v775
  %v779 = vmul.f32 %v617, %v775
  %v780 = vmul.f32 %v622, %v775
  %v781 = vmul.f32 %v627, %v775
  %v782 = vmul.f32 %v632, %v775
  %v783 = vmul.f32 %v637, %v775
  %v784 = vmul.f32 %v642, %v775
  %v785 = vmul.f32 %v647, %v775
  %v786 = vmul.f32 %v652, %v775
  %v787 = vmul.f32 %v657, %v775
  %v788 = vmul.f32 %v662, %v775
  %v789 = vmul.f32 %v667, %v775
  %v790 = vmul.f32 %v672, %v775
  %v791 = vmul.f32 %v677, %v775
  %v793 = vlaneseq
  %v794 = vshrl.u32 %v793, 7
  %v795 = vsub.s32 0, %v794
  %v796 = vrot.slane %v771, %v795
  %v798 = vadd.f32 %v776, %v796
  %v799 = vadd.f32 %v777, %v796
  %v800 = vadd.f32 %v778, %v796
  %v801 = vadd.f32 %v779, %v796
  %v802 = vadd.f32 %v780, %v796
  %v803 = vadd.f32 %v781, %v796
  %v804 = vadd.f32 %v782, %v796
  %v805 = vadd.f32 %v783, %v796
  %v806 = vadd.f32 %v784, %v796
  %v807 = vadd.f32 %v785, %v796
  %v808 = vadd.f32 %v786, %v796
  %v809 = vadd.f32 %v787, %v796
  %v810 = vadd.f32 %v788, %v796
  %v811 = vadd.f32 %v789, %v796
  %v812 = vadd.f32 %v790, %v796
  %v813 = vadd.f32 %v791, %v796
  %v814 = vmax.f32 %v798, 0.0
  %v815 = vmax.f32 %v799, 0.0
  %v816 = vmax.f32 %v800, 0.0
  %v817 = vmax.f32 %v801, 0.0
  %v818 = vmax.f32 %v802, 0.0
  %v819 = vmax.f32 %v803, 0.0
  %v820 = vmax.f32 %v804, 0.0
  %v821 = vmax.f32 %v805, 0.0
  %v822 = vmax.f32 %v806, 0.0
  %v823 = vmax.f32 %v807, 0.0
  %v824 = vmax.f32 %v808, 0.0
  %v825 = vmax.f32 %v809, 0.0
  %v826 = vmax.f32 %v810, 0.0
  %v827 = vmax.f32 %v811, 0.0
  %v828 = vmax.f32 %v812, 0.0
  %v829 = vmax.f32 %v813, 0.0
  %830 = vst [vmem:[%s4] sm:$0xff] %v814
  %831 = vst [vmem:[%s4 + $0x8] sm:$0xff] %v815
  %832 = vst [vmem:[%s4 + $0x10] sm:$0xff] %v816
  %833 = vst [vmem:[%s4 + $0x18] sm:$0xff] %v817
  %834 = vst [vmem:[%s4 + $0x20] sm:$0xff] %v818
  %835 = vst [vmem:[%s4 + $0x28] sm:$0xff] %v819
  %836 = vst [vmem:[%s4 + $0x30] sm:$0xff] %v820
  %837 = vst [vmem:[%s4 + $0x38] sm:$0xff] %v821
  %838 = vst [vmem:[%s4 + $0x40] sm:$0xff] %v822
  %839 = vst [vmem:[%s4 + $0x48] sm:$0xff] %v823
  %840 = vst [vmem:[%s4 + $0x50] sm:$0xff] %v824
  %841 = vst [vmem:[%s4 + $0x58] sm:$0xff] %v825
  %842 = vst [vmem:[%s4 + $0x60] sm:$0xff] %v826
  %843 = vst [vmem:[%s4 + $0x68] sm:$0xff] %v827
  %844 = vst [vmem:[%s4 + $0x70] sm:$0xff] %v828
  %845 = vst [vmem:[%s4 + $0x78] sm:$0xff] %v829
  %s846 = scalar_lea.vmem %s0, 768
  %v847 = vld [vmem:[%s846] sm:$0xff]
  %v848 = vld [vmem:[%s846 + $0x8] sm:$0xff]
  %v849 = vld [vmem:[%s846 + $0x10] sm:$0xff]
  %v850 = vld [vmem:[%s846 + $0x18] sm:$0xff]
  %v851 = vld [vmem:[%s846 + $0x20] sm:$0xff]
  %v852 = vld [vmem:[%s846 + $0x28] sm:$0xff]
  %v853 = vld [vmem:[%s846 + $0x30] sm:$0xff]
  %v854 = vld [vmem:[%s846 + $0x38] sm:$0xff]
  %v855 = vld [vmem:[%s846 + $0x40] sm:$0xff]
  %v856 = vld [vmem:[%s846 + $0x48] sm:$0xff]
  %v857 = vld [vmem:[%s846 + $0x50] sm:$0xff]
  %v858 = vld [vmem:[%s846 + $0x58] sm:$0xff]
  %v859 = vld [vmem:[%s846 + $0x60] sm:$0xff]
  %v860 = vld [vmem:[%s846 + $0x68] sm:$0xff]
  %v861 = vld [vmem:[%s846 + $0x70] sm:$0xff]
  %v862 = vld [vmem:[%s846 + $0x78] sm:$0xff]
  %v863 = vld [vmem:[%s846 + $0x80] sm:$0xff]
  %v864 = vld [vmem:[%s846 + $0x88] sm:$0xff]
  %v865 = vld [vmem:[%s846 + $0x90] sm:$0xff]
  %v866 = vld [vmem:[%s846 + $0x98] sm:$0xff]
  %v867 = vld [vmem:[%s846 + $0xa0] sm:$0xff]
  %v868 = vld [vmem:[%s846 + $0xa8] sm:$0xff]
  %v869 = vld [vmem:[%s846 + $0xb0] sm:$0xff]
  %v870 = vld [vmem:[%s846 + $0xb8] sm:$0xff]
  %v871 = vld [vmem:[%s846 + $0xc0] sm:$0xff]
  %v872 = vld [vmem:[%s846 + $0xc8] sm:$0xff]
  %v873 = vld [vmem:[%s846 + $0xd0] sm:$0xff]
  %v874 = vld [vmem:[%s846 + $0xd8] sm:$0xff]
  %v875 = vld [vmem:[%s846 + $0xe0] sm:$0xff]
  %v876 = vld [vmem:[%s846 + $0xe8] sm:$0xff]
  %v877 = vld [vmem:[%s846 + $0xf0] sm:$0xff]
  %v878 = vld [vmem:[%s846 + $0xf8] sm:$0xff]
  %v879 = vld [vmem:[%s846 + $0x100] sm:$0xff]
  %v880 = vld [vmem:[%s846 + $0x108] sm:$0xff]
  %v881 = vld [vmem:[%s846 + $0x110] sm:$0xff]
  %v882 = vld [vmem:[%s846 + $0x118] sm:$0xff]
  %v883 = vld [vmem:[%s846 + $0x120] sm:$0xff]
  %v884 = vld [vmem:[%s846 + $0x128] sm:$0xff]
  %v885 = vld [vmem:[%s846 + $0x130] sm:$0xff]
  %v886 = vld [vmem:[%s846 + $0x138] sm:$0xff]
  %v887 = vld [vmem:[%s846 + $0x140] sm:$0xff]
  %v888 = vld [vmem:[%s846 + $0x148] sm:$0xff]
  %v889 = vld [vmem:[%s846 + $0x150] sm:$0xff]
  %v890 = vld [vmem:[%s846 + $0x158] sm:$0xff]
  %v891 = vld [vmem:[%s846 + $0x160] sm:$0xff]
  %v892 = vld [vmem:[%s846 + $0x168] sm:$0xff]
  %v893 = vld [vmem:[%s846 + $0x170] sm:$0xff]
  %v894 = vld [vmem:[%s846 + $0x178] sm:$0xff]
  %v895 = vld [vmem:[%s846 + $0x180] sm:$0xff]
  %v896 = vld [vmem:[%s846 + $0x188] sm:$0xff]
  %v897 = vld [vmem:[%s846 + $0x190] sm:$0xff]
  %v898 = vld [vmem:[%s846 + $0x198] sm:$0xff]
  %v899 = vld [vmem:[%s846 + $0x1a0] sm:$0xff]
  %v900 = vld [vmem:[%s846 + $0x1a8] sm:$0xff]
  %v901 = vld [vmem:[%s846 + $0x1b0] sm:$0xff]
  %v902 = vld [vmem:[%s846 + $0x1b8] sm:$0xff]
  %v903 = vld [vmem:[%s846 + $0x1c0] sm:$0xff]
  %v904 = vld [vmem:[%s846 + $0x1c8] sm:$0xff]
  %v905 = vld [vmem:[%s846 + $0x1d0] sm:$0xff]
  %v906 = vld [vmem:[%s846 + $0x1d8] sm:$0xff]
  %v907 = vld [vmem:[%s846 + $0x1e0] sm:$0xff]
  %v908 = vld [vmem:[%s846 + $0x1e8] sm:$0xff]
  %v909 = vld [vmem:[%s846 + $0x1f0] sm:$0xff]
  %v910 = vld [vmem:[%s846 + $0x1f8] sm:$0xff]
  %v911 = vld [vmem:[%s846 + $0x200] sm:$0xff]
  %v912 = vld [vmem:[%s846 + $0x208] sm:$0xff]
  %v913 = vld [vmem:[%s846 + $0x210] sm:$0xff]
  %v914 = vld [vmem:[%s846 + $0x218] sm:$0xff]
  %v915 = vld [vmem:[%s846 + $0x220] sm:$0xff]
  %v916 = vld [vmem:[%s846 + $0x228] sm:$0xff]
  %v917 = vld [vmem:[%s846 + $0x230] sm:$0xff]
  %v918 = vld [vmem:[%s846 + $0x238] sm:$0xff]
  %v919 = vld [vmem:[%s846 + $0x240] sm:$0xff]
  %v920 = vld [vmem:[%s846 + $0x248] sm:$0xff]
  %v921 = vld [vmem:[%s846 + $0x250] sm:$0xff]
  %v922 = vld [vmem:[%s846 + $0x258] sm:$0xff]
  %v923 = vld [vmem:[%s846 + $0x260] sm:$0xff]
  %v924 = vld [vmem:[%s846 + $0x268] sm:$0xff]
  %v925 = vld [vmem:[%s846 + $0x270] sm:$0xff]
  %v926 = vld [vmem:[%s846 + $0x278] sm:$0xff]
  %v927 = vld [vmem:[%s846 + $0x280] sm:$0xff]
  %v928 = vld [vmem:[%s846 + $0x288] sm:$0xff]
  %v929 = vld [vmem:[%s846 + $0x290] sm:$0xff]
  %v930 = vld [vmem:[%s846 + $0x298] sm:$0xff]
  %v931 = vld [vmem:[%s846 + $0x2a0] sm:$0xff]
  %v932 = vld [vmem:[%s846 + $0x2a8] sm:$0xff]
  %v933 = vld [vmem:[%s846 + $0x2b0] sm:$0xff]
  %v934 = vld [vmem:[%s846 + $0x2b8] sm:$0xff]
  %v935 = vld [vmem:[%s846 + $0x2c0] sm:$0xff]
  %v936 = vld [vmem:[%s846 + $0x2c8] sm:$0xff]
  %v937 = vld [vmem:[%s846 + $0x2d0] sm:$0xff]
  %v938 = vld [vmem:[%s846 + $0x2d8] sm:$0xff]
  %v939 = vld [vmem:[%s846 + $0x2e0] sm:$0xff]
  %v940 = vld [vmem:[%s846 + $0x2e8] sm:$0xff]
  %v941 = vld [vmem:[%s846 + $0x2f0] sm:$0xff]
  %v942 = vld [vmem:[%s846 + $0x2f8] sm:$0xff]
  %v944 = vsel %vm196, %v852, 0
  %v947 = vsel %vm196, %v858, 0
  %v950 = vsel %vm196, %v864, 0
  %v953 = vsel %vm196, %v870, 0
  %v956 = vsel %vm196, %v876, 0
  %v959 = vsel %vm196, %v882, 0
  %v962 = vsel %vm196, %v888, 0
  %v965 = vsel %vm196, %v894, 0
  %v968 = vsel %vm196, %v900, 0
  %v971 = vsel %vm196, %v906, 0
  %v974 = vsel %vm196, %v912, 0
  %v977 = vsel %vm196, %v918, 0
  %v980 = vsel %vm196, %v924, 0
  %v983 = vsel %vm196, %v930, 0
  %v986 = vsel %vm196, %v936, 0
  %v989 = vsel %vm196, %v942, 0
  %991 = vmatprep.subr.mxu0 0.0
  %992 = vmatpush1.msra.mxu0 %v17
  %993 = vmatprep.subr.mxu0 0.0
  %994 = vmatpush1.msra.mxu0 %v18
  %995 = vmatprep.subr.mxu0 0.0
  %996 = vmatpush1.msra.mxu0 %v19
  %997 = vmatprep.subr.mxu0 0.0
  %998 = vmatpush1.msra.mxu0 %v20
  %999 = vmatprep.subr.mxu0 0.0
  %1000 = vmatpush1.msra.mxu0 %v21
  %1001 = vmatprep.subr.mxu0 0.0
  %1002 = vmatpush1.msra.mxu0 %v22
  %1003 = vmatprep.subr.mxu0 0.0
  %1004 = vmatpush1.msra.mxu0 %v23
  %1005 = vmatprep.subr.mxu0 0.0
  %1006 = vmatpush1.msra.mxu0 %v24
  %1007 = vmatprep.subr.mxu0 0.0
  %1008 = vmatpush1.msra.mxu0 %v25
  %1009 = vmatprep.subr.mxu0 0.0
  %1010 = vmatpush1.msra.mxu0 %v26
  %1011 = vmatprep.subr.mxu0 0.0
  %1012 = vmatpush1.msra.mxu0 %v27
  %1013 = vmatprep.subr.mxu0 0.0
  %1014 = vmatpush1.msra.mxu0 %v28
  %1015 = vmatprep.subr.mxu0 0.0
  %1016 = vmatpush1.msra.mxu0 %v29
  %1017 = vmatprep.subr.mxu0 0.0
  %1018 = vmatpush1.msra.mxu0 %v30
  %1019 = vmatprep.subr.mxu0 0.0
  %1020 = vmatpush1.msra.mxu0 %v31
  %1021 = vmatprep.subr.mxu0 0.0
  %1022 = vmatpush1.msra.mxu0 %v32
  %1023 = vmatprep.subr.mxu0 0.0
  %1024 = vmatpush1.msra.mxu0 %v33
  %1025 = vmatprep.subr.mxu0 0.0
  %1026 = vmatpush1.msra.mxu0 %v34
  %1027 = vmatprep.subr.mxu0 0.0
  %1028 = vmatpush1.msra.mxu0 %v35
  %1029 = vmatprep.subr.mxu0 0.0
  %1030 = vmatpush1.msra.mxu0 %v36
  %1031 = vmatprep.subr.mxu0 0.0
  %1032 = vmatpush1.msra.mxu0 %v37
  %1033 = vmatprep.subr.mxu0 0.0
  %1034 = vmatpush1.msra.mxu0 %v38
  %1035 = vmatprep.subr.mxu0 0.0
  %1036 = vmatpush1.msra.mxu0 %v39
  %1037 = vmatprep.subr.mxu0 0.0
  %1038 = vmatpush1.msra.mxu0 %v40
  %1039 = vmatprep.subr.mxu0 0.0
  %1040 = vmatpush1.msra.mxu0 %v41
  %1041 = vmatprep.subr.mxu0 0.0
  %1042 = vmatpush1.msra.mxu0 %v42
  %1043 = vmatprep.subr.mxu0 0.0
  %1044 = vmatpush1.msra.mxu0 %v43
  %1045 = vmatprep.subr.mxu0 0.0
  %1046 = vmatpush1.msra.mxu0 %v44
  %1047 = vmatprep.subr.mxu0 0.0
  %1048 = vmatpush1.msra.mxu0 %v45
  %1049 = vmatprep.subr.mxu0 0.0
  %1050 = vmatpush1.msra.mxu0 %v46
  %1051 = vmatprep.subr.mxu0 0.0
  %1052 = vmatpush1.msra.mxu0 %v47
  %1053 = vmatprep.subr.mxu0 0.0
  %1054 = vmatpush1.msra.mxu0 %v48
  %1055 = vmatprep.mubr.f32.mxu0 %v848
  %1056 = vmatmul.mubr.f32.gmra.mrb[0].mxu0 %v847
  %v1057 = vpop.f32.mrb[0].mxu0
  %v1058 = vadd.f32 0.0, %v1057
  %v1059 = vpop.f32.mrb[0].mxu0
  %1060 = vmatprep.mubr.f32.mxu0 %v854
  %1061 = vmatmul.mubr.f32.gmra.mrb[0].mxu0 %v853
  %v1062 = vpop.f32.mrb[0].mxu0
  %v1063 = vadd.f32 0.0, %v1062
  %v1064 = vpop.f32.mrb[0].mxu0
  %1065 = vmatprep.mubr.f32.mxu0 %v860
  %1066 = vmatmul.mubr.f32.gmra.mrb[0].mxu0 %v859
  %v1067 = vpop.f32.mrb[0].mxu0
  %v1068 = vadd.f32 0.0, %v1067
  %v1069 = vpop.f32.mrb[0].mxu0
  %1070 = vmatprep.mubr.f32.mxu0 %v866
  %1071 = vmatmul.mubr.f32.gmra.mrb[0].mxu0 %v865
  %v1072 = vpop.f32.mrb[0].mxu0
  %v1073 = vadd.f32 0.0, %v1072
  %v1074 = vpop.f32.mrb[0].mxu0
  %1075 = vmatprep.mubr.f32.mxu0 %v872
  %1076 = vmatmul.mubr.f32.gmra.mrb[0].mxu0 %v871
  %v1077 = vpop.f32.mrb[0].mxu0
  %v1078 = vadd.f32 0.0, %v1077
  %v1079 = vpop.f32.mrb[0].mxu0
  %1080 = vmatprep.mubr.f32.mxu0 %v878
  %1081 = vmatmul.mubr.f32.gmra.mrb[0].mxu0 %v877
  %v1082 = vpop.f32.mrb[0].mxu0
  %v1083 = vadd.f32 0.0, %v1082
  %v1084 = vpop.f32.mrb[0].mxu0
  %1085 = vmatprep.mubr.f32.mxu0 %v884
  %1086 = vmatmul.mubr.f32.gmra.mrb[0].mxu0 %v883
  %v1087 = vpop.f32.mrb[0].mxu0
  %v1088 = vadd.f32 0.0, %v1087
  %v1089 = vpop.f32.mrb[0].mxu0
  %1090 = vmatprep.mubr.f32.mxu0 %v890
  %1091 = vmatmul.mubr.f32.gmra.mrb[0].mxu0 %v889
  %v1092 = vpop.f32.mrb[0].mxu0
  %v1093 = vadd.f32 0.0, %v1092
  %v1094 = vpop.f32.mrb[0].mxu0
  %1095 = vmatprep.mubr.f32.mxu0 %v896
  %1096 = vmatmul.mubr.f32.gmra.mrb[0].mxu0 %v895
  %v1097 = vpop.f32.mrb[0].mxu0
  %v1098 = vadd.f32 0.0, %v1097
  %v1099 = vpop.f32.mrb[0].mxu0
  %1100 = vmatprep.mubr.f32.mxu0 %v902
  %1101 = vmatmul.mubr.f32.gmra.mrb[0].mxu0 %v901
  %v1102 = vpop.f32.mrb[0].mxu0
  %v1103 = vadd.f32 0.0, %v1102
  %v1104 = vpop.f32.mrb[0].mxu0
  %1105 = vmatprep.mubr.f32.mxu0 %v908
  %1106 = vmatmul.mubr.f32.gmra.mrb[0].mxu0 %v907
  %v1107 = vpop.f32.mrb[0].mxu0
  %v1108 = vadd.f32 0.0, %v1107
  %v1109 = vpop.f32.mrb[0].mxu0
  %1110 = vmatprep.mubr.f32.mxu0 %v914
  %1111 = vmatmul.mubr.f32.gmra.mrb[0].mxu0 %v913
  %v1112 = vpop.f32.mrb[0].mxu0
  %v1113 = vadd.f32 0.0, %v1112
  %v1114 = vpop.f32.mrb[0].mxu0
  %1115 = vmatprep.mubr.f32.mxu0 %v920
  %1116 = vmatmul.mubr.f32.gmra.mrb[0].mxu0 %v919
  %v1117 = vpop.f32.mrb[0].mxu0
  %v1118 = vadd.f32 0.0, %v1117
  %v1119 = vpop.f32.mrb[0].mxu0
  %1120 = vmatprep.mubr.f32.mxu0 %v926
  %1121 = vmatmul.mubr.f32.gmra.mrb[0].mxu0 %v925
  %v1122 = vpop.f32.mrb[0].mxu0
  %v1123 = vadd.f32 0.0, %v1122
  %v1124 = vpop.f32.mrb[0].mxu0
  %1125 = vmatprep.mubr.f32.mxu0 %v932
  %1126 = vmatmul.mubr.f32.gmra.mrb[0].mxu0 %v931
  %v1127 = vpop.f32.mrb[0].mxu0
  %v1128 = vadd.f32 0.0, %v1127
  %v1129 = vpop.f32.mrb[0].mxu0
  %1130 = vmatprep.mubr.f32.mxu0 %v938
  %1131 = vmatmul.mubr.f32.gmra.mrb[0].mxu0 %v937
  %v1132 = vpop.f32.mrb[0].mxu0
  %v1133 = vadd.f32 0.0, %v1132
  %v1134 = vpop.f32.mrb[0].mxu0
  %1135 = vdwg.mxu0
  %1136 = vmatprep.subr.mxu0 0.0
  %1137 = vmatpush1.msra.mxu0 %v49
  %1138 = vmatprep.subr.mxu0 0.0
  %1139 = vmatpush1.msra.mxu0 %v50
  %1140 = vmatprep.subr.mxu0 0.0
  %1141 = vmatpush1.msra.mxu0 %v51
  %1142 = vmatprep.subr.mxu0 0.0
  %1143 = vmatpush1.msra.mxu0 %v52
  %1144 = vmatprep.subr.mxu0 0.0
  %1145 = vmatpush1.msra.mxu0 %v53
  %1146 = vmatprep.subr.mxu0 0.0
  %1147 = vmatpush1.msra.mxu0 %v54
  %1148 = vmatprep.subr.mxu0 0.0
  %1149 = vmatpush1.msra.mxu0 %v55
  %1150 = vmatprep.subr.mxu0 0.0
  %1151 = vmatpush1.msra.mxu0 %v56
  %1152 = vmatprep.subr.mxu0 0.0
  %1153 = vmatpush1.msra.mxu0 %v57
  %1154 = vmatprep.subr.mxu0 0.0
  %1155 = vmatpush1.msra.mxu0 %v58
  %1156 = vmatprep.subr.mxu0 0.0
  %1157 = vmatpush1.msra.mxu0 %v59
  %1158 = vmatprep.subr.mxu0 0.0
  %1159 = vmatpush1.msra.mxu0 %v60
  %1160 = vmatprep.subr.mxu0 0.0
  %1161 = vmatpush1.msra.mxu0 %v61
  %1162 = vmatprep.subr.mxu0 0.0
  %1163 = vmatpush1.msra.mxu0 %v62
  %1164 = vmatprep.subr.mxu0 0.0
  %1165 = vmatpush1.msra.mxu0 %v63
  %1166 = vmatprep.subr.mxu0 0.0
  %1167 = vmatpush1.msra.mxu0 %v64
  %1168 = vmatprep.subr.mxu0 0.0
  %1169 = vmatpush1.msra.mxu0 %v65
  %1170 = vmatprep.subr.mxu0 0.0
  %1171 = vmatpush1.msra.mxu0 %v66
  %1172 = vmatprep.subr.mxu0 0.0
  %1173 = vmatpush1.msra.mxu0 %v67
  %1174 = vmatprep.subr.mxu0 0.0
  %1175 = vmatpush1.msra.mxu0 %v68
  %1176 = vmatprep.subr.mxu0 0.0
  %1177 = vmatpush1.msra.mxu0 %v69
  %1178 = vmatprep.subr.mxu0 0.0
  %1179 = vmatpush1.msra.mxu0 %v70
  %1180 = vmatprep.subr.mxu0 0.0
  %1181 = vmatpush1.msra.mxu0 %v71
  %1182 = vmatprep.subr.mxu0 0.0
  %1183 = vmatpush1.msra.mxu0 %v72
  %1184 = vmatprep.subr.mxu0 0.0
  %1185 = vmatpush1.msra.mxu0 %v73
  %1186 = vmatprep.subr.mxu0 0.0
  %1187 = vmatpush1.msra.mxu0 %v74
  %1188 = vmatprep.subr.mxu0 0.0
  %1189 = vmatpush1.msra.mxu0 %v75
  %1190 = vmatprep.subr.mxu0 0.0
  %1191 = vmatpush1.msra.mxu0 %v76
  %1192 = vmatprep.subr.mxu0 0.0
  %1193 = vmatpush1.msra.mxu0 %v77
  %1194 = vmatprep.subr.mxu0 0.0
  %1195 = vmatpush1.msra.mxu0 %v78
  %1196 = vmatprep.subr.mxu0 0.0
  %1197 = vmatpush1.msra.mxu0 %v79
  %1198 = vmatprep.subr.mxu0 0.0
  %1199 = vmatpush1.msra.mxu0 %v80
  %1200 = vmatprep.mubr.f32.mxu0 %v850
  %1201 = vmatmul.mubr.f32.gmra.mrb[0].mxu0 %v849
  %v1202 = vpop.f32.mrb[0].mxu0
  %v1203 = vadd.f32 %v1058, %v1202
  %v1204 = vpop.f32.mrb[0].mxu0
  %1205 = vmatprep.mubr.f32.mxu0 %v856
  %1206 = vmatmul.mubr.f32.gmra.mrb[0].mxu0 %v855
  %v1207 = vpop.f32.mrb[0].mxu0
  %v1208 = vadd.f32 %v1063, %v1207
  %v1209 = vpop.f32.mrb[0].mxu0
  %1210 = vmatprep.mubr.f32.mxu0 %v862
  %1211 = vmatmul.mubr.f32.gmra.mrb[0].mxu0 %v861
  %v1212 = vpop.f32.mrb[0].mxu0
  %v1213 = vadd.f32 %v1068, %v1212
  %v1214 = vpop.f32.mrb[0].mxu0
  %1215 = vmatprep.mubr.f32.mxu0 %v868
  %1216 = vmatmul.mubr.f32.gmra.mrb[0].mxu0 %v867
  %v1217 = vpop.f32.mrb[0].mxu0
  %v1218 = vadd.f32 %v1073, %v1217
  %v1219 = vpop.f32.mrb[0].mxu0
  %1220 = vmatprep.mubr.f32.mxu0 %v874
  %1221 = vmatmul.mubr.f32.gmra.mrb[0].mxu0 %v873
  %v1222 = vpop.f32.mrb[0].mxu0
  %v1223 = vadd.f32 %v1078, %v1222
  %v1224 = vpop.f32.mrb[0].mxu0
  %1225 = vmatprep.mubr.f32.mxu0 %v880
  %1226 = vmatmul.mubr.f32.gmra.mrb[0].mxu0 %v879
  %v1227 = vpop.f32.mrb[0].mxu0
  %v1228 = vadd.f32 %v1083, %v1227
  %v1229 = vpop.f32.mrb[0].mxu0
  %1230 = vmatprep.mubr.f32.mxu0 %v886
  %1231 = vmatmul.mubr.f32.gmra.mrb[0].mxu0 %v885
  %v1232 = vpop.f32.mrb[0].mxu0
  %v1233 = vadd.f32 %v1088, %v1232
  %v1234 = vpop.f32.mrb[0].mxu0
  %1235 = vmatprep.mubr.f32.mxu0 %v892
  %1236 = vmatmul.mubr.f32.gmra.mrb[0].mxu0 %v891
  %v1237 = vpop.f32.mrb[0].mxu0
  %v1238 = vadd.f32 %v1093, %v1237
  %v1239 = vpop.f32.mrb[0].mxu0
  %1240 = vmatprep.mubr.f32.mxu0 %v898
  %1241 = vmatmul.mubr.f32.gmra.mrb[0].mxu0 %v897
  %v1242 = vpop.f32.mrb[0].mxu0
  %v1243 = vadd.f32 %v1098, %v1242
  %v1244 = vpop.f32.mrb[0].mxu0
  %1245 = vmatprep.mubr.f32.mxu0 %v904
  %1246 = vmatmul.mubr.f32.gmra.mrb[0].mxu0 %v903
  %v1247 = vpop.f32.mrb[0].mxu0
  %v1248 = vadd.f32 %v1103, %v1247
  %v1249 = vpop.f32.mrb[0].mxu0
  %1250 = vmatprep.mubr.f32.mxu0 %v910
  %1251 = vmatmul.mubr.f32.gmra.mrb[0].mxu0 %v909
  %v1252 = vpop.f32.mrb[0].mxu0
  %v1253 = vadd.f32 %v1108, %v1252
  %v1254 = vpop.f32.mrb[0].mxu0
  %1255 = vmatprep.mubr.f32.mxu0 %v916
  %1256 = vmatmul.mubr.f32.gmra.mrb[0].mxu0 %v915
  %v1257 = vpop.f32.mrb[0].mxu0
  %v1258 = vadd.f32 %v1113, %v1257
  %v1259 = vpop.f32.mrb[0].mxu0
  %1260 = vmatprep.mubr.f32.mxu0 %v922
  %1261 = vmatmul.mubr.f32.gmra.mrb[0].mxu0 %v921
  %v1262 = vpop.f32.mrb[0].mxu0
  %v1263 = vadd.f32 %v1118, %v1262
  %v1264 = vpop.f32.mrb[0].mxu0
  %1265 = vmatprep.mubr.f32.mxu0 %v928
  %1266 = vmatmul.mubr.f32.gmra.mrb[0].mxu0 %v927
  %v1267 = vpop.f32.mrb[0].mxu0
  %v1268 = vadd.f32 %v1123, %v1267
  %v1269 = vpop.f32.mrb[0].mxu0
  %1270 = vmatprep.mubr.f32.mxu0 %v934
  %1271 = vmatmul.mubr.f32.gmra.mrb[0].mxu0 %v933
  %v1272 = vpop.f32.mrb[0].mxu0
  %v1273 = vadd.f32 %v1128, %v1272
  %v1274 = vpop.f32.mrb[0].mxu0
  %1275 = vmatprep.mubr.f32.mxu0 %v940
  %1276 = vmatmul.mubr.f32.gmra.mrb[0].mxu0 %v939
  %v1277 = vpop.f32.mrb[0].mxu0
  %v1278 = vadd.f32 %v1133, %v1277
  %v1279 = vpop.f32.mrb[0].mxu0
  %1280 = vdwg.mxu0
  %1281 = vmatprep.subr.mxu0 0.0
  %1282 = vmatpush1.msra.mxu0 %v81
  %1283 = vmatprep.subr.mxu0 0.0
  %1284 = vmatpush1.msra.mxu0 %v82
  %1285 = vmatprep.subr.mxu0 0.0
  %1286 = vmatpush1.msra.mxu0 %v83
  %1287 = vmatprep.subr.mxu0 0.0
  %1288 = vmatpush1.msra.mxu0 %v84
  %1289 = vmatprep.subr.mxu0 0.0
  %1290 = vmatpush1.msra.mxu0 %v85
  %1291 = vmatprep.subr.mxu0 0.0
  %1292 = vmatpush1.msra.mxu0 %v86
  %1293 = vmatprep.subr.mxu0 0.0
  %1294 = vmatpush1.msra.mxu0 %v87
  %1295 = vmatprep.subr.mxu0 0.0
  %1296 = vmatpush1.msra.mxu0 %v88
  %1297 = vmatprep.subr.mxu0 0.0
  %1298 = vmatpush1.msra.mxu0 %v89
  %1299 = vmatprep.subr.mxu0 0.0
  %1300 = vmatpush1.msra.mxu0 %v90
  %1301 = vmatprep.subr.mxu0 0.0
  %1302 = vmatpush1.msra.mxu0 %v91
  %1303 = vmatprep.subr.mxu0 0.0
  %1304 = vmatpush1.msra.mxu0 %v92
  %1305 = vmatprep.subr.mxu0 0.0
  %1306 = vmatpush1.msra.mxu0 %v93
  %1307 = vmatprep.subr.mxu0 0.0
  %1308 = vmatpush1.msra.mxu0 %v94
  %1309 = vmatprep.subr.mxu0 0.0
  %1310 = vmatpush1.msra.mxu0 %v95
  %1311 = vmatprep.subr.mxu0 0.0
  %1312 = vmatpush1.msra.mxu0 %v96
  %1313 = vmatprep.subr.mxu0 0.0
  %1314 = vmatpush1.msra.mxu0 %v97
  %1315 = vmatprep.subr.mxu0 0.0
  %1316 = vmatpush1.msra.mxu0 0.0
  %1317 = vmatprep.subr.mxu0 0.0
  %1318 = vmatpush1.msra.mxu0 0.0
  %1319 = vmatprep.subr.mxu0 0.0
  %1320 = vmatpush1.msra.mxu0 0.0
  %1321 = vmatprep.subr.mxu0 0.0
  %1322 = vmatpush1.msra.mxu0 0.0
  %1323 = vmatprep.subr.mxu0 0.0
  %1324 = vmatpush1.msra.mxu0 0.0
  %1325 = vmatprep.subr.mxu0 0.0
  %1326 = vmatpush1.msra.mxu0 0.0
  %1327 = vmatprep.subr.mxu0 0.0
  %1328 = vmatpush1.msra.mxu0 0.0
  %1329 = vmatprep.subr.mxu0 0.0
  %1330 = vmatpush1.msra.mxu0 0.0
  %1331 = vmatprep.subr.mxu0 0.0
  %1332 = vmatpush1.msra.mxu0 0.0
  %1333 = vmatprep.subr.mxu0 0.0
  %1334 = vmatpush1.msra.mxu0 0.0
  %1335 = vmatprep.subr.mxu0 0.0
  %1336 = vmatpush1.msra.mxu0 0.0
  %1337 = vmatprep.subr.mxu0 0.0
  %1338 = vmatpush1.msra.mxu0 0.0
  %1339 = vmatprep.subr.mxu0 0.0
  %1340 = vmatpush1.msra.mxu0 0.0
  %1341 = vmatprep.subr.mxu0 0.0
  %1342 = vmatpush1.msra.mxu0 0.0
  %1343 = vmatprep.subr.mxu0 0.0
  %1344 = vmatpush1.msra.mxu0 0.0
  %1345 = vmatprep.mubr.f32.mxu0 %v944
  %1346 = vmatmul.mubr.f32.gmra.mrb[0].mxu0 %v851
  %v1347 = vpop.f32.mrb[0].mxu0
  %v1348 = vadd.f32 %v1203, %v1347
  %v1349 = vpop.f32.mrb[0].mxu0
  %1350 = vmatprep.mubr.f32.mxu0 %v947
  %1351 = vmatmul.mubr.f32.gmra.mrb[0].mxu0 %v857
  %v1352 = vpop.f32.mrb[0].mxu0
  %v1353 = vadd.f32 %v1208, %v1352
  %v1354 = vpop.f32.mrb[0].mxu0
  %1355 = vmatprep.mubr.f32.mxu0 %v950
  %1356 = vmatmul.mubr.f32.gmra.mrb[0].mxu0 %v863
  %v1357 = vpop.f32.mrb[0].mxu0
  %v1358 = vadd.f32 %v1213, %v1357
  %v1359 = vpop.f32.mrb[0].mxu0
  %1360 = vmatprep.mubr.f32.mxu0 %v953
  %1361 = vmatmul.mubr.f32.gmra.mrb[0].mxu0 %v869
  %v1362 = vpop.f32.mrb[0].mxu0
  %v1363 = vadd.f32 %v1218, %v1362
  %v1364 = vpop.f32.mrb[0].mxu0
  %1365 = vmatprep.mubr.f32.mxu0 %v956
  %1366 = vmatmul.mubr.f32.gmra.mrb[0].mxu0 %v875
  %v1367 = vpop.f32.mrb[0].mxu0
  %v1368 = vadd.f32 %v1223, %v1367
  %v1369 = vpop.f32.mrb[0].mxu0
  %1370 = vmatprep.mubr.f32.mxu0 %v959
  %1371 = vmatmul.mubr.f32.gmra.mrb[0].mxu0 %v881
  %v1372 = vpop.f32.mrb[0].mxu0
  %v1373 = vadd.f32 %v1228, %v1372
  %v1374 = vpop.f32.mrb[0].mxu0
  %1375 = vmatprep.mubr.f32.mxu0 %v962
  %1376 = vmatmul.mubr.f32.gmra.mrb[0].mxu0 %v887
  %v1377 = vpop.f32.mrb[0].mxu0
  %v1378 = vadd.f32 %v1233, %v1377
  %v1379 = vpop.f32.mrb[0].mxu0
  %1380 = vmatprep.mubr.f32.mxu0 %v965
  %1381 = vmatmul.mubr.f32.gmra.mrb[0].mxu0 %v893
  %v1382 = vpop.f32.mrb[0].mxu0
  %v1383 = vadd.f32 %v1238, %v1382
  %v1384 = vpop.f32.mrb[0].mxu0
  %1385 = vmatprep.mubr.f32.mxu0 %v968
  %1386 = vmatmul.mubr.f32.gmra.mrb[0].mxu0 %v899
  %v1387 = vpop.f32.mrb[0].mxu0
  %v1388 = vadd.f32 %v1243, %v1387
  %v1389 = vpop.f32.mrb[0].mxu0
  %1390 = vmatprep.mubr.f32.mxu0 %v971
  %1391 = vmatmul.mubr.f32.gmra.mrb[0].mxu0 %v905
  %v1392 = vpop.f32.mrb[0].mxu0
  %v1393 = vadd.f32 %v1248, %v1392
  %v1394 = vpop.f32.mrb[0].mxu0
  %1395 = vmatprep.mubr.f32.mxu0 %v974
  %1396 = vmatmul.mubr.f32.gmra.mrb[0].mxu0 %v911
  %v1397 = vpop.f32.mrb[0].mxu0
  %v1398 = vadd.f32 %v1253, %v1397
  %v1399 = vpop.f32.mrb[0].mxu0
  %1400 = vmatprep.mubr.f32.mxu0 %v977
  %1401 = vmatmul.mubr.f32.gmra.mrb[0].mxu0 %v917
  %v1402 = vpop.f32.mrb[0].mxu0
  %v1403 = vadd.f32 %v1258, %v1402
  %v1404 = vpop.f32.mrb[0].mxu0
  %1405 = vmatprep.mubr.f32.mxu0 %v980
  %1406 = vmatmul.mubr.f32.gmra.mrb[0].mxu0 %v923
  %v1407 = vpop.f32.mrb[0].mxu0
  %v1408 = vadd.f32 %v1263, %v1407
  %v1409 = vpop.f32.mrb[0].mxu0
  %1410 = vmatprep.mubr.f32.mxu0 %v983
  %1411 = vmatmul.mubr.f32.gmra.mrb[0].mxu0 %v929
  %v1412 = vpop.f32.mrb[0].mxu0
  %v1413 = vadd.f32 %v1268, %v1412
  %v1414 = vpop.f32.mrb[0].mxu0
  %1415 = vmatprep.mubr.f32.mxu0 %v986
  %1416 = vmatmul.mubr.f32.gmra.mrb[0].mxu0 %v935
  %v1417 = vpop.f32.mrb[0].mxu0
  %v1418 = vadd.f32 %v1273, %v1417
  %v1419 = vpop.f32.mrb[0].mxu0
  %1420 = vmatprep.mubr.f32.mxu0 %v989
  %1421 = vmatmul.mubr.f32.gmra.mrb[0].mxu0 %v941
  %v1422 = vpop.f32.mrb[0].mxu0
  %v1423 = vadd.f32 %v1278, %v1422
  %v1424 = vpop.f32.mrb[0].mxu0
  %1425 = vdwg.mxu0
  %v1426 = vadd.f32 %v1348, %v1353
  %v1427 = vadd.f32 %v1426, %v1358
  %v1428 = vadd.f32 %v1427, %v1363
  %v1429 = vadd.f32 %v1428, %v1368
  %v1430 = vadd.f32 %v1429, %v1373
  %v1431 = vadd.f32 %v1430, %v1378
  %v1432 = vadd.f32 %v1431, %v1383
  %v1433 = vadd.f32 %v1432, %v1388
  %v1434 = vadd.f32 %v1433, %v1393
  %v1435 = vadd.f32 %v1434, %v1398
  %v1436 = vadd.f32 %v1435, %v1403
  %v1437 = vadd.f32 %v1436, %v1408
  %v1438 = vadd.f32 %v1437, %v1413
  %v1439 = vadd.f32 %v1438, %v1418
  %v1440 = vadd.f32 %v1439, %v1423
  %v1441 = vrot.slane %v1440, 4
  %v1442 = vadd.f32 %v1440, %v1441
  %v1443 = vrot.slane %v1442, 2
  %v1444 = vadd.f32 %v1442, %v1443
  %v1445 = vrot.slane %v1444, 1
  %v1446 = vadd.f32 %v1444, %v1445
  %v1447 = vmul.f32 %v1348, %v1348
  %v1448 = vmul.f32 %v1353, %v1353
  %v1449 = vmul.f32 %v1358, %v1358
  %v1450 = vmul.f32 %v1363, %v1363
  %v1451 = vmul.f32 %v1368, %v1368
  %v1452 = vmul.f32 %v1373, %v1373
  %v1453 = vmul.f32 %v1378, %v1378
  %v1454 = vmul.f32 %v1383, %v1383
  %v1455 = vmul.f32 %v1388, %v1388
  %v1456 = vmul.f32 %v1393, %v1393
  %v1457 = vmul.f32 %v1398, %v1398
  %v1458 = vmul.f32 %v1403, %v1403
  %v1459 = vmul.f32 %v1408, %v1408
  %v1460 = vmul.f32 %v1413, %v1413
  %v1461 = vmul.f32 %v1418, %v1418
  %v1462 = vmul.f32 %v1423, %v1423
  %v1463 = vadd.f32 %v1447, %v1448
  %v1464 = vadd.f32 %v1463, %v1449
  %v1465 = vadd.f32 %v1464, %v1450
  %v1466 = vadd.f32 %v1465, %v1451
  %v1467 = vadd.f32 %v1466, %v1452
  %v1468 = vadd.f32 %v1467, %v1453
  %v1469 = vadd.f32 %v1468, %v1454
  %v1470 = vadd.f32 %v1469, %v1455
  %v1471 = vadd.f32 %v1470, %v1456
  %v1472 = vadd.f32 %v1471, %v1457
  %v1473 = vadd.f32 %v1472, %v1458
  %v1474 = vadd.f32 %v1473, %v1459
  %v1475 = vadd.f32 %v1474, %v1460
  %v1476 = vadd.f32 %v1475, %v1461
  %v1477 = vadd.f32 %v1476, %v1462
  %v1478 = vrot.slane %v1477, 4
  %v1479 = vadd.f32 %v1477, %v1478
  %v1480 = vrot.slane %v1479, 2
  %v1481 = vadd.f32 %v1479, %v1480
  %v1482 = vrot.slane %v1481, 1
  %v1483 = vadd.f32 %v1481, %v1482
  %1484 = vrot.lane.b32.xlu0 %v1446, 8
  %v1485 = vpop.permute.xlu0 %1484
  %v1486 = vadd.f32 %v1446, %v1485
  %1487 = vrot.lane.b32.xlu0 %v1486, 16
  %v1488 = vpop.permute.xlu0 %1487
  %v1489 = vadd.f32 %v1486, %v1488
  %1490 = vrot.lane.b32.xlu0 %v1489, 32
  %v1491 = vpop.permute.xlu0 %1490
  %v1492 = vadd.f32 %v1489, %v1491
  %1493 = vrot.lane.b32.xlu0 %v1492, 64
  %v1494 = vpop.permute.xlu0 %1493
  %v1495 = vadd.f32 %v1492, %v1494
  %v1496 = vmul.f32 %v1495, %v750
  %1497 = vrot.lane.b32.xlu0 %v1483, 8
  %v1498 = vpop.permute.xlu0 %1497
  %v1499 = vadd.f32 %v1483, %v1498
  %1500 = vrot.lane.b32.xlu0 %v1499, 16
  %v1501 = vpop.permute.xlu0 %1500
  %v1502 = vadd.f32 %v1499, %v1501
  %1503 = vrot.lane.b32.xlu0 %v1502, 32
  %v1504 = vpop.permute.xlu0 %1503
  %v1505 = vadd.f32 %v1502, %v1504
  %1506 = vrot.lane.b32.xlu0 %v1505, 64
  %v1507 = vpop.permute.xlu0 %1506
  %v1508 = vadd.f32 %v1505, %v1507
  %v1509 = vmul.f32 %v1508, %v750
  %v1510 = vmul.f32 %v1496, %v1496
  %v1511 = vsub.f32 %v1509, %v1510
  %v1512 = vadd.f32 %v1511, 1e-05
  %v1513 = vrsqrt.pop %v1512
  %v1514 = vmul.f32 %v1513, %v98
  %v1515 = vmul.f32 %v1496, %v1514
  %v1516 = vsub.f32 %v99, %v1515
  %v1517 = vlaneseq
  %v1518 = vshrl.u32 %v1517, 7
  %v1519 = vsub.s32 0, %v1518
  %v1520 = vrot.slane %v1514, %v1519
  %v1521 = vmul.f32 %v1348, %v1520
  %v1522 = vmul.f32 %v1353, %v1520
  %v1523 = vmul.f32 %v1358, %v1520
  %v1524 = vmul.f32 %v1363, %v1520
  %v1525 = vmul.f32 %v1368, %v1520
  %v1526 = vmul.f32 %v1373, %v1520
  %v1527 = vmul.f32 %v1378, %v1520
  %v1528 = vmul.f32 %v1383, %v1520
  %v1529 = vmul.f32 %v1388, %v1520
  %v1530 = vmul.f32 %v1393, %v1520
  %v1531 = vmul.f32 %v1398, %v1520
  %v1532 = vmul.f32 %v1403, %v1520
  %v1533 = vmul.f32 %v1408, %v1520
  %v1534 = vmul.f32 %v1413, %v1520
  %v1535 = vmul.f32 %v1418, %v1520
  %v1536 = vmul.f32 %v1423, %v1520
  %v1538 = vlaneseq
  %v1539 = vshrl.u32 %v1538, 7
  %v1540 = vsub.s32 0, %v1539
  %v1541 = vrot.slane %v1516, %v1540
  %v1543 = vadd.f32 %v1521, %v1541
  %v1544 = vadd.f32 %v1522, %v1541
  %v1545 = vadd.f32 %v1523, %v1541
  %v1546 = vadd.f32 %v1524, %v1541
  %v1547 = vadd.f32 %v1525, %v1541
  %v1548 = vadd.f32 %v1526, %v1541
  %v1549 = vadd.f32 %v1527, %v1541
  %v1550 = vadd.f32 %v1528, %v1541
  %v1551 = vadd.f32 %v1529, %v1541
  %v1552 = vadd.f32 %v1530, %v1541
  %v1553 = vadd.f32 %v1531, %v1541
  %v1554 = vadd.f32 %v1532, %v1541
  %v1555 = vadd.f32 %v1533, %v1541
  %v1556 = vadd.f32 %v1534, %v1541
  %v1557 = vadd.f32 %v1535, %v1541
  %v1558 = vadd.f32 %v1536, %v1541
  %v1559 = vmax.f32 %v1543, 0.0
  %v1560 = vmax.f32 %v1544, 0.0
  %v1561 = vmax.f32 %v1545, 0.0
  %v1562 = vmax.f32 %v1546, 0.0
  %v1563 = vmax.f32 %v1547, 0.0
  %v1564 = vmax.f32 %v1548, 0.0
  %v1565 = vmax.f32 %v1549, 0.0
  %v1566 = vmax.f32 %v1550, 0.0
  %v1567 = vmax.f32 %v1551, 0.0
  %v1568 = vmax.f32 %v1552, 0.0
  %v1569 = vmax.f32 %v1553, 0.0
  %v1570 = vmax.f32 %v1554, 0.0
  %v1571 = vmax.f32 %v1555, 0.0
  %v1572 = vmax.f32 %v1556, 0.0
  %v1573 = vmax.f32 %v1557, 0.0
  %v1574 = vmax.f32 %v1558, 0.0
  %s1575 = scalar_lea.vmem %s4, 128
  %1576 = vst [vmem:[%s1575] sm:$0xff] %v1559
  %1577 = vst [vmem:[%s1575 + $0x8] sm:$0xff] %v1560
  %1578 = vst [vmem:[%s1575 + $0x10] sm:$0xff] %v1561
  %1579 = vst [vmem:[%s1575 + $0x18] sm:$0xff] %v1562
  %1580 = vst [vmem:[%s1575 + $0x20] sm:$0xff] %v1563
  %1581 = vst [vmem:[%s1575 + $0x28] sm:$0xff] %v1564
  %1582 = vst [vmem:[%s1575 + $0x30] sm:$0xff] %v1565
  %1583 = vst [vmem:[%s1575 + $0x38] sm:$0xff] %v1566
  %1584 = vst [vmem:[%s1575 + $0x40] sm:$0xff] %v1567
  %1585 = vst [vmem:[%s1575 + $0x48] sm:$0xff] %v1568
  %1586 = vst [vmem:[%s1575 + $0x50] sm:$0xff] %v1569
  %1587 = vst [vmem:[%s1575 + $0x58] sm:$0xff] %v1570
  %1588 = vst [vmem:[%s1575 + $0x60] sm:$0xff] %v1571
  %1589 = vst [vmem:[%s1575 + $0x68] sm:$0xff] %v1572
  %1590 = vst [vmem:[%s1575 + $0x70] sm:$0xff] %v1573
  %1591 = vst [vmem:[%s1575 + $0x78] sm:$0xff] %v1574
  // Predicated region
  $region18: #{conv_block_forward.1} parent=0 // pred_check
    _
  $region19: #{conv_block_forward.1} parent=0 // pred_check_branch
    %1593 = sbr.rel (0) target = $region21
  $region20: #{conv_block_forward.1} parent=0 // pred_region
    _
  $region21: #{conv_block_forward.1} parent=0 // pred_fallthru
    _
  // Predicated region
  $region22: #{conv_block_forward.1} parent=0 // pred_check
    _
  $region23: #{conv_block_forward.1} parent=0 // pred_check_branch
    %1595 = sbr.rel (0) target = $region25
  $region24: #{conv_block_forward.1} parent=0 // pred_region
    _
  $region25: #{conv_block_forward.1} parent=0 // pred_fallthru
    _

</llo_original>
